<compile_context>
chip_gen: v6e
topology: v6e:2x2x1
jax: 0.10.0
libtpu: 0.0.40
codegen_flags: <defaults>
</compile_context>

<pallas_src>
import math
import functools

import jax
import jax.numpy as jnp
from jax.experimental import pallas as pl
from jax.experimental.pallas import tpu as pltpu


# --------------------------- budgets / small helpers ---------------------------

def _detect_vmem_limit():
    """Generation-aware scoped-VMEM budget (~75% of physical VMEM)."""
    cap = 128 * 1024 * 1024
    try:
        cap = int(pltpu.get_tpu_info().vmem_capacity_bytes)
    except Exception:
        pass
    return max(32 * 1024 * 1024, (cap * 3) // 4)


_VMEM_LIMIT = _detect_vmem_limit()
# Bigger row tiles amortize per-grid-step overhead; smaller cap on 64 MiB parts (v7x).
_ROW_TILE_CAP = 1024 if _VMEM_LIMIT >= 96 * 1024 * 1024 else 512
_ATTN_Q_TILE_CAP = 256
# Exact reciprocal for softmax normalization (set True for the faster EUP approx).
SOFTMAX_APPROX_RECIP = False
LN_EPS = 1e-5


def _cparams(*semantics):
    return pltpu.CompilerParams(dimension_semantics=tuple(semantics),
                                vmem_limit_bytes=int(_VMEM_LIMIT))


def _resident(shape, index_map):
    """BlockSpec for grid-invariant inputs (weights / biases / LN params).

    Constant block index never re-fetches, so single-buffer it to reclaim the
    dead second pipeline buffer (most valuable on v7x's 64 MiB VMEM).
    """
    try:
        return pl.BlockSpec(shape, index_map, pipeline_mode=pl.Buffered(1))
    except Exception:
        return pl.BlockSpec(shape, index_map)


def _mult8_tile(n, cap):
    """Largest multiple-of-8 divisor of n <= cap giving >= 2 grid steps."""
    for t in range(min(cap, n // 2), 7, -1):
        if n % t == 0 and t % 8 == 0:
            return t
    return n


def _leading_tile(n, cap):
    """Largest divisor of n <= cap giving >= 2 grid steps (leading block dims
    have no (8,128) constraint)."""
    for t in range(min(cap, n // 2), 0, -1):
        if n % t == 0:
            return t
    return n


def _mm_t(x, w):
    """x[M, K] @ w[N, K]^T -> [M, N] f32: bf16 MXU inputs, f32 accumulation."""
    return jax.lax.dot_general(
        x.astype(jnp.bfloat16), w.astype(jnp.bfloat16),
        dimension_numbers=(((1,), (1,)), ((), ())),
        preferred_element_type=jnp.float32,
    )


def _layernorm(y, g, b, eps):
    mu = jnp.mean(y, axis=-1, keepdims=True)
    var = jnp.mean(jnp.square(y - mu), axis=-1, keepdims=True)
    return (y - mu) * jax.lax.rsqrt(var + eps) * g + b


# ----------------------------- Pallas kernels ------------------------------

def _embed_pe_kernel(e_ref, pe_ref, o_ref, *, scale):
    # x = emb * sqrt(ninp) + positional_encoding  (f32 math, bf16 store)
    o_ref[...] = (e_ref[...].astype(jnp.float32) * scale
                  + pe_ref[...]).astype(o_ref.dtype)


def embed_scale_pe(emb, pe, scale):
    S, B, E = emb.shape
    ts = _leading_tile(S, _ROW_TILE_CAP)
    return pl.pallas_call(
        functools.partial(_embed_pe_kernel, scale=scale),
        out_shape=jax.ShapeDtypeStruct((S, B, E), jnp.bfloat16),
        grid=(S // ts,),
        in_specs=[
            pl.BlockSpec((ts, B, E), lambda i: (i, 0, 0)),
            pl.BlockSpec((ts, 1, E), lambda i: (i, 0, 0)),
        ],
        out_specs=pl.BlockSpec((ts, B, E), lambda i: (i, 0, 0)),
        compiler_params=_cparams("parallel"),
    )(emb, pe)


def _qkv_proj_kernel(x_ref, w_ref, b_ref, o_ref):
    # qkv = x @ W_qkv^T + b   (Q rows of W/b pre-scaled by 1/sqrt(Dh))
    o_ref[...] = (_mm_t(x_ref[...], w_ref[...]) + b_ref[...]).astype(o_ref.dtype)


def qkv_projection(x, wqkv, bqkv):
    M, E = x.shape
    threeE = wqkv.shape[0]
    tm = _mult8_tile(M, _ROW_TILE_CAP)
    return pl.pallas_call(
        _qkv_proj_kernel,
        out_shape=jax.ShapeDtypeStruct((M, threeE), jnp.bfloat16),
        grid=(M // tm,),
        in_specs=[
            pl.BlockSpec((tm, E), lambda i: (i, 0)),
            _resident((threeE, E), lambda i: (0, 0)),
            _resident((1, threeE), lambda i: (0, 0)),
        ],
        out_specs=pl.BlockSpec((tm, threeE), lambda i: (i, 0)),
        compiler_params=_cparams("parallel"),
    )(x, wqkv, bqkv)


def _attn_core_kernel(q_ref, k_ref, v_ref, o_ref, *, causal, q_tile):
    # One (batch, head, query-tile) per grid step; keys/values full-S resident.
    q = q_ref[0, 0]                                   # [tq, Dh] bf16 (pre-scaled)
    k = k_ref[0, 0]                                   # [S, Dh]  bf16
    v = v_ref[0, 0]                                   # [S, Dh]  bf16
    s = jax.lax.dot_general(q, k, (((1,), (1,)), ((), ())),
                            preferred_element_type=jnp.float32)   # [tq, S]
    if causal:
        qi = pl.program_id(2)
        rows = jax.lax.broadcasted_iota(jnp.int32, s.shape, 0) + qi * q_tile
        cols = jax.lax.broadcasted_iota(jnp.int32, s.shape, 1)
        s = jnp.where(cols > rows, jnp.float32(-1e30), s)
    s = s - jnp.max(s, axis=-1, keepdims=True)
    p = jnp.exp(s)
    p = p * pl.reciprocal(jnp.sum(p, axis=-1, keepdims=True),
                          approx=SOFTMAX_APPROX_RECIP)
    o_ref[0, 0] = jnp.dot(p.astype(jnp.bfloat16), v,
                          preferred_element_type=jnp.float32).astype(o_ref.dtype)
    # TODO(synk): for very long S, tile K/V with an online-softmax (flash) loop.


def attention_core(qkv_h, *, nhead, causal):
    B, threeH, S, Dh = qkv_h.shape
    H = nhead
    tq = _mult8_tile(S, _ATTN_Q_TILE_CAP)
    return pl.pallas_call(
        functools.partial(_attn_core_kernel, causal=causal, q_tile=tq),
        out_shape=jax.ShapeDtypeStruct((B, H, S, Dh), jnp.bfloat16),
        grid=(B, H, S // tq),
        in_specs=[
            pl.BlockSpec((1, 1, tq, Dh), lambda b, h, qi: (b, h, qi, 0)),
            pl.BlockSpec((1, 1, S, Dh), lambda b, h, qi: (b, H + h, 0, 0)),
            pl.BlockSpec((1, 1, S, Dh), lambda b, h, qi: (b, 2 * H + h, 0, 0)),
        ],
        out_specs=pl.BlockSpec((1, 1, tq, Dh), lambda b, h, qi: (b, h, qi, 0)),
        compiler_params=_cparams("parallel", "parallel", "parallel"),
    )(qkv_h, qkv_h, qkv_h)


def _post_attn_kernel(attn_ref, x_ref, wo_ref, bo_ref, g1_ref, b1_ref,
                      w1_ref, bb1_ref, w2_ref, bb2_ref, g2_ref, b2_ref,
                      o_ref, *, eps):
    # out-proj -> +residual -> LN1 -> FFN(relu) -> +residual -> LN2
    a = _mm_t(attn_ref[...], wo_ref[...]) + bo_ref[...]
    h = _layernorm(x_ref[...].astype(jnp.float32) + a, g1_ref[...], b1_ref[...], eps)
    ff = jnp.maximum(_mm_t(h, w1_ref[...]) + bb1_ref[...], 0.0)
    y = _mm_t(ff, w2_ref[...]) + bb2_ref[...]
    o_ref[...] = _layernorm(h + y, g2_ref[...], b2_ref[...], eps).astype(o_ref.dtype)


def post_attention_block(attn, x, lp, eps=LN_EPS):
    M, E = x.shape
    nhid = lp["w1"].shape[0]
    tm = _mult8_tile(M, _ROW_TILE_CAP)
    return pl.pallas_call(
        functools.partial(_post_attn_kernel, eps=eps),
        out_shape=jax.ShapeDtypeStruct((M, E), jnp.bfloat16),
        grid=(M // tm,),
        in_specs=[
            pl.BlockSpec((tm, E), lambda i: (i, 0)),
            pl.BlockSpec((tm, E), lambda i: (i, 0)),
            _resident((E, E), lambda i: (0, 0)),
            _resident((1, E), lambda i: (0, 0)),
            _resident((1, E), lambda i: (0, 0)),
            _resident((1, E), lambda i: (0, 0)),
            _resident((nhid, E), lambda i: (0, 0)),
            _resident((1, nhid), lambda i: (0, 0)),
            _resident((E, nhid), lambda i: (0, 0)),
            _resident((1, E), lambda i: (0, 0)),
            _resident((1, E), lambda i: (0, 0)),
            _resident((1, E), lambda i: (0, 0)),
        ],
        out_specs=pl.BlockSpec((tm, E), lambda i: (i, 0)),
        compiler_params=_cparams("parallel"),
    )(attn, x, lp["wo"], lp["bo"], lp["ln1_g"], lp["ln1_b"],
      lp["w1"], lp["b1"], lp["w2"], lp["b2"], lp["ln2_g"], lp["ln2_b"])


def _decoder_kernel(x_ref, g_ref, b_ref, w_ref, db_ref, o_ref, *, eps):
    # final LayerNorm -> decoder linear -> exact log_softmax (f32)
    xn = _layernorm(x_ref[...].astype(jnp.float32), g_ref[...], b_ref[...], eps)
    logits = _mm_t(xn, w_ref[...]) + db_ref[...]
    z = logits - jnp.max(logits, axis=-1, keepdims=True)
    o_ref[...] = z - jnp.log(jnp.sum(jnp.exp(z), axis=-1, keepdims=True))
    # TODO(synk): for large vocab, add a V grid axis ("arbitrary") with an online
    # logsumexp so VMEM use is independent of V (v7x 64 MiB).


def decoder_log_softmax(x, g, beta, dec_w, dec_b, eps=LN_EPS):
    M, E = x.shape
    V = dec_w.shape[0]
    tm = _mult8_tile(M, _ROW_TILE_CAP)
    return pl.pallas_call(
        functools.partial(_decoder_kernel, eps=eps),
        out_shape=jax.ShapeDtypeStruct((M, V), jnp.float32),
        grid=(M // tm,),
        in_specs=[
            pl.BlockSpec((tm, E), lambda i: (i, 0)),
            _resident((1, E), lambda i: (0, 0)),
            _resident((1, E), lambda i: (0, 0)),
            _resident((V, E), lambda i: (0, 0)),
            _resident((1, V), lambda i: (0, 0)),
        ],
        out_specs=pl.BlockSpec((tm, V), lambda i: (i, 0)),
        compiler_params=_cparams("parallel"),
    )(x, g, beta, dec_w, dec_b)


# ------------------------------ model (glue) -------------------------------

def make_positional_encoding(seq_len, d_model):
    position = jnp.arange(seq_len, dtype=jnp.float32)[:, None]
    div_term = jnp.exp(jnp.arange(0, d_model, 2, dtype=jnp.float32)
                       * (-math.log(10000.0) / d_model))
    pe = jnp.zeros((seq_len, d_model), jnp.float32)
    pe = pe.at[:, 0::2].set(jnp.sin(position * div_term))
    pe = pe.at[:, 1::2].set(jnp.cos(position * div_term))
    return pe[:, None, :]  # [S, 1, E]


def xavier_uniform(key, shape):
    fan_out, fan_in = shape
    bound = math.sqrt(6.0 / (fan_in + fan_out))
    return jax.random.uniform(key, shape, jnp.float32, -bound, bound)


def init_params(key, ntoken, ninp, nhead, nhid, nlayers):
    keys = jax.random.split(key, 2 + 4 * nlayers)
    params = {
        "emb": jax.random.uniform(keys[0], (ntoken, ninp), jnp.float32, -0.1, 0.1),
        "dec_w": jax.random.uniform(keys[1], (ntoken, ninp), jnp.float32, -0.1, 0.1),
        "dec_b": jnp.zeros((ntoken,), jnp.float32),
        "norm_g": jnp.ones((ninp,), jnp.float32),
        "norm_b": jnp.zeros((ninp,), jnp.float32),
        "layers": [],
    }
    for l in range(nlayers):
        k0, k1, k2, k3 = keys[2 + 4 * l: 6 + 4 * l]
        params["layers"].append(dict(
            in_proj_w=xavier_uniform(k0, (3 * ninp, ninp)),
            in_proj_b=jnp.zeros((3 * ninp,), jnp.float32),
            out_proj_w=xavier_uniform(k1, (ninp, ninp)),
            out_proj_b=jnp.zeros((ninp,), jnp.float32),
            w1=xavier_uniform(k2, (nhid, ninp)),
            b1=jnp.zeros((nhid,), jnp.float32),
            w2=xavier_uniform(k3, (ninp, nhid)),
            b2=jnp.zeros((ninp,), jnp.float32),
            ln1_g=jnp.ones((ninp,), jnp.float32),
            ln1_b=jnp.zeros((ninp,), jnp.float32),
            ln2_g=jnp.ones((ninp,), jnp.float32),
            ln2_b=jnp.zeros((ninp,), jnp.float32),
        ))
    return params


def prepare_params(params, nhead):
    """One-time prep: bf16 weights (halves steady-state weight HBM traffic),
    fold 1/sqrt(Dh) into the Q rows of in_proj, 2-D biases / LN params."""
    E = params["emb"].shape[1]
    Dh = E // nhead
    qscale = jnp.concatenate(
        [jnp.full((E,), 1.0 / math.sqrt(Dh), jnp.float32),
         jnp.ones((2 * E,), jnp.float32)])
    layers = []
    for lp in params["layers"]:
        layers.append(dict(
            wqkv=(lp["in_proj_w"] * qscale[:, None]).astype(jnp.bfloat16),
            bqkv=(lp["in_proj_b"] * qscale).reshape(1, 3 * E),
            wo=lp["out_proj_w"].astype(jnp.bfloat16),
            bo=lp["out_proj_b"].reshape(1, E),
            ln1_g=lp["ln1_g"].reshape(1, E), ln1_b=lp["ln1_b"].reshape(1, E),
            w1=lp["w1"].astype(jnp.bfloat16), b1=lp["b1"].reshape(1, -1),
            w2=lp["w2"].astype(jnp.bfloat16), b2=lp["b2"].reshape(1, E),
            ln2_g=lp["ln2_g"].reshape(1, E), ln2_b=lp["ln2_b"].reshape(1, E),
        ))
    return dict(
        emb=params["emb"].astype(jnp.bfloat16),
        dec_w=params["dec_w"].astype(jnp.bfloat16),
        dec_b=params["dec_b"].reshape(1, -1),
        norm_g=params["norm_g"].reshape(1, -1),
        norm_b=params["norm_b"].reshape(1, -1),
        layers=layers,
    )


@functools.partial(jax.jit, static_argnames=("use_mask", "nhead"))
def transformer_forward(prep, src, *, use_mask, nhead):
    S, B = src.shape
    E = prep["emb"].shape[1]
    V = prep["dec_w"].shape[0]
    Dh = E // nhead
    M = S * B

    # Embedding gather (XLA, bf16 table) + scale + positional encoding (Pallas).
    # TODO(synk): fuse the gather via scalar-prefetched token ids.
    emb = prep["emb"][src]                                    # [S, B, E] bf16
    pe = make_positional_encoding(S, E)                       # [S, 1, E] f32
    x = embed_scale_pe(emb, pe, math.sqrt(E)).reshape(M, E)   # [M, E] bf16 (seq-major)

    for lp in prep["layers"]:
        qkv = qkv_projection(x, lp["wqkv"], lp["bqkv"])                  # [M, 3E] bf16
        # head-major layout for the attention core (small XLA relayout)
        qkv_h = qkv.reshape(S, B, 3 * nhead, Dh).transpose(1, 2, 0, 3)   # [B, 3H, S, Dh]
        attn_h = attention_core(qkv_h, nhead=nhead, causal=use_mask)     # [B, H, S, Dh]
        attn = attn_h.transpose(2, 0, 1, 3).reshape(M, E)                # [M, E] bf16
        x = post_attention_block(attn, x, lp)                            # [M, E] bf16

    # Final LN -> decoder -> log_softmax; rows are seq-major so this reshape IS
    # the PyTorch [S, B, ntoken] layout (no output transpose).
    out = decoder_log_softmax(x, prep["norm_g"], prep["norm_b"],
                              prep["dec_w"], prep["dec_b"])              # [M, V] f32
    return out.reshape(S, B, V)


if __name__ == "__main__":
    ntoken, ninp, nhead, nhid, nlayers = 50, 32, 4, 64, 2
    S, B = 8, 2

    key = jax.random.PRNGKey(0)
    pkey, skey = jax.random.split(key)
    params = init_params(pkey, ntoken, ninp, nhead, nhid, nlayers)
    prep = prepare_params(params, nhead)
    src = jax.random.randint(skey, (S, B), 0, ntoken, dtype=jnp.int32)

    out = transformer_forward(prep, src, use_mask=True, nhead=nhead)
    out = jax.block_until_ready(out)

    assert out.shape == (S, B, ntoken), out.shape
    assert bool(jnp.all(jnp.isfinite(out)))
    # rows of log_softmax should (log-)sum to ~0
    assert bool(jnp.all(jnp.abs(jax.nn.logsumexp(out, axis=-1)) < 1e-3))
    print("KERNEL_OK")
</pallas_src>

<mosaic_0001>
module attributes {stable_mosaic.version = 11 : i64} {
  func.func @_embed_pe_kernel(%arg0: i32, %arg1: memref<4x2x32xbf16, #tpu.memory_space<vmem>>, %arg2: memref<4x1x32xf32, #tpu.memory_space<vmem>>, %arg3: memref<4x2x32xbf16, #tpu.memory_space<vmem>>) attributes {dimension_semantics = [#tpu.dimension_semantics<parallel>], iteration_bounds = array<i64: 2>, scalar_prefetch = 0 : i64, scratch_operands = 0 : i64, tpu.core_type = #tpu.core_type<tc>, window_params = [{transform_indices = @transform_0, window_bounds = array<i64: 4, 2, 32>}, {transform_indices = @transform_1, window_bounds = array<i64: 4, 1, 32>}, {transform_indices = @transform_2, window_bounds = array<i64: 4, 2, 32>}]} {
    %c0 = arith.constant 0 : index
    %c0_0 = arith.constant 0 : index
    %c0_1 = arith.constant 0 : index
    %0 = vector.load %arg1[%c0, %c0_0, %c0_1] : memref<4x2x32xbf16, #tpu.memory_space<vmem>>, vector<4x2x32xbf16>
    %1 = arith.extf %0 : vector<4x2x32xbf16> to vector<4x2x32xf32>
    %cst = arith.constant 5.65685415 : f32
    %2 = vector.broadcast %cst : f32 to vector<4x2x32xf32>
    %3 = arith.mulf %1, %2 : vector<4x2x32xf32>
    %c0_2 = arith.constant 0 : index
    %c0_3 = arith.constant 0 : index
    %c0_4 = arith.constant 0 : index
    %4 = vector.load %arg2[%c0_2, %c0_3, %c0_4] : memref<4x1x32xf32, #tpu.memory_space<vmem>>, vector<4x1x32xf32>
    %5 = vector.broadcast %4 : vector<4x1x32xf32> to vector<4x2x32xf32>
    %6 = arith.addf %3, %5 : vector<4x2x32xf32>
    %7 = arith.truncf %6 : vector<4x2x32xf32> to vector<4x2x32xbf16>
    %c0_5 = arith.constant 0 : index
    %c0_6 = arith.constant 0 : index
    %c0_7 = arith.constant 0 : index
    %8 = vector.load %arg3[%c0_5, %c0_6, %c0_7] : memref<4x2x32xbf16, #tpu.memory_space<vmem>>, vector<4x2x32xbf16>
    tpu.vector_store %arg3[%c0_5, %c0_6, %c0_7], %7 {strides = array<i32>} : memref<4x2x32xbf16, #tpu.memory_space<vmem>>, vector<4x2x32xbf16>,
    return
  }
  func.func @transform_0(%arg0: i32) -> (i32, i32, i32) {
    %c0_i32 = arith.constant 0 : i32
    %c0_i32_0 = arith.constant 0 : i32
    %c0_i32_1 = arith.constant 0 : i32
    return %arg0, %c0_i32, %c0_i32_0 : i32, i32, i32
  }
  func.func @transform_1(%arg0: i32) -> (i32, i32, i32) {
    %c0_i32 = arith.constant 0 : i32
    %c0_i32_0 = arith.constant 0 : i32
    %c0_i32_1 = arith.constant 0 : i32
    return %arg0, %c0_i32, %c0_i32_0 : i32, i32, i32
  }
  func.func @transform_2(%arg0: i32) -> (i32, i32, i32) {
    %c0_i32 = arith.constant 0 : i32
    %c0_i32_0 = arith.constant 0 : i32
    %c0_i32_1 = arith.constant 0 : i32
    return %arg0, %c0_i32, %c0_i32_0 : i32, i32, i32
  }
}

module attributes {stable_mosaic.version = 11 : i64} {
  func.func @_qkv_proj_kernel(%arg0: i32, %arg1: memref<8x32xbf16, #tpu.memory_space<vmem>>, %arg2: memref<96x32xbf16, #tpu.memory_space<vmem>>, %arg3: memref<1x96xf32, #tpu.memory_space<vmem>>, %arg4: memref<8x96xbf16, #tpu.memory_space<vmem>>) attributes {dimension_semantics = [#tpu.dimension_semantics<parallel>], iteration_bounds = array<i64: 2>, scalar_prefetch = 0 : i64, scratch_operands = 0 : i64, tpu.core_type = #tpu.core_type<tc>, window_params = [{transform_indices = @transform_0, window_bounds = array<i64: 8, 32>}, {pipeline_mode = #tpu.pipeline_mode<synchronous>, transform_indices = @transform_1, window_bounds = array<i64: 96, 32>}, {pipeline_mode = #tpu.pipeline_mode<synchronous>, transform_indices = @transform_2, window_bounds = array<i64: 1, 96>}, {transform_indices = @transform_3, window_bounds = array<i64: 8, 96>}]} {
    %c0 = arith.constant 0 : index
    %c0_0 = arith.constant 0 : index
    %0 = vector.load %arg1[%c0, %c0_0] : memref<8x32xbf16, #tpu.memory_space<vmem>>, vector<8x32xbf16>
    %c0_1 = arith.constant 0 : index
    %c0_2 = arith.constant 0 : index
    %1 = vector.load %arg2[%c0_1, %c0_2] : memref<96x32xbf16, #tpu.memory_space<vmem>>, vector<96x32xbf16>
    %cst = arith.constant dense<0.000000e+00> : vector<8x96xf32>
    %2 = tpu.matmul %0, %1, %cst {dimension_numbers = #tpu.dot_dimension_numbers<[1], [1], [0], [0], [0, 0, 1, 0], [], []>} : vector<8x32xbf16>, vector<96x32xbf16>, vector<8x96xf32> -> vector<8x96xf32>
    %c0_3 = arith.constant 0 : index
    %c0_4 = arith.constant 0 : index
    %3 = vector.load %arg3[%c0_3, %c0_4] : memref<1x96xf32, #tpu.memory_space<vmem>>, vector<1x96xf32>
    %4 = vector.broadcast %3 : vector<1x96xf32> to vector<8x96xf32>
    %5 = arith.addf %2, %4 : vector<8x96xf32>
    %6 = arith.truncf %5 : vector<8x96xf32> to vector<8x96xbf16>
    %c0_5 = arith.constant 0 : index
    %c0_6 = arith.constant 0 : index
    %7 = vector.load %arg4[%c0_5, %c0_6] : memref<8x96xbf16, #tpu.memory_space<vmem>>, vector<8x96xbf16>
    tpu.vector_store %arg4[%c0_5, %c0_6], %6 {strides = array<i32>} : memref<8x96xbf16, #tpu.memory_space<vmem>>, vector<8x96xbf16>,
    return
  }
  func.func @transform_0(%arg0: i32) -> (i32, i32) {
    %c0_i32 = arith.constant 0 : i32
    %c0_i32_0 = arith.constant 0 : i32
    return %arg0, %c0_i32 : i32, i32
  }
  func.func @transform_1(%arg0: i32) -> (i32, i32) {
    %c0_i32 = arith.constant 0 : i32
    %c0_i32_0 = arith.constant 0 : i32
    %c0_i32_1 = arith.constant 0 : i32
    return %c0_i32, %c0_i32_0 : i32, i32
  }
  func.func @transform_2(%arg0: i32) -> (i32, i32) {
    %c0_i32 = arith.constant 0 : i32
    %c0_i32_0 = arith.constant 0 : i32
    %c0_i32_1 = arith.constant 0 : i32
    return %c0_i32, %c0_i32_0 : i32, i32
  }
  func.func @transform_3(%arg0: i32) -> (i32, i32) {
    %c0_i32 = arith.constant 0 : i32
    %c0_i32_0 = arith.constant 0 : i32
    return %arg0, %c0_i32 : i32, i32
  }
}

module attributes {stable_mosaic.version = 11 : i64} {
  func.func @_attn_core_kernel(%arg0: i32, %arg1: i32, %arg2: i32, %arg3: memref<1x1x8x8xbf16, #tpu.memory_space<vmem>>, %arg4: memref<1x1x8x8xbf16, #tpu.memory_space<vmem>>, %arg5: memref<1x1x8x8xbf16, #tpu.memory_space<vmem>>, %arg6: memref<1x1x8x8xbf16, #tpu.memory_space<vmem>>) attributes {dimension_semantics = [#tpu.dimension_semantics<parallel>, #tpu.dimension_semantics<parallel>, #tpu.dimension_semantics<parallel>], iteration_bounds = array<i64: 2, 4, 1>, scalar_prefetch = 0 : i64, scratch_operands = 0 : i64, tpu.core_type = #tpu.core_type<tc>, window_params = [{transform_indices = @transform_0, window_bounds = array<i64: 1, 1, 8, 8>}, {transform_indices = @transform_1, window_bounds = array<i64: 1, 1, 8, 8>}, {transform_indices = @transform_2, window_bounds = array<i64: 1, 1, 8, 8>}, {transform_indices = @transform_3, window_bounds = array<i64: 1, 1, 8, 8>}]} {
    %c0 = arith.constant 0 : index
    %c0_0 = arith.constant 0 : index
    %c0_1 = arith.constant 0 : index
    %c0_2 = arith.constant 0 : index
    %0 = vector.load %arg3[%c0, %c0_0, %c0_1, %c0_2] : memref<1x1x8x8xbf16, #tpu.memory_space<vmem>>, vector<1x1x8x8xbf16>
    %1 = vector.shape_cast %0 : vector<1x1x8x8xbf16> to vector<8x8xbf16>
    %c0_3 = arith.constant 0 : index
    %c0_4 = arith.constant 0 : index
    %c0_5 = arith.constant 0 : index
    %c0_6 = arith.constant 0 : index
    %2 = vector.load %arg4[%c0_3, %c0_4, %c0_5, %c0_6] : memref<1x1x8x8xbf16, #tpu.memory_space<vmem>>, vector<1x1x8x8xbf16>
    %3 = vector.shape_cast %2 : vector<1x1x8x8xbf16> to vector<8x8xbf16>
    %c0_7 = arith.constant 0 : index
    %c0_8 = arith.constant 0 : index
    %c0_9 = arith.constant 0 : index
    %c0_10 = arith.constant 0 : index
    %4 = vector.load %arg5[%c0_7, %c0_8, %c0_9, %c0_10] : memref<1x1x8x8xbf16, #tpu.memory_space<vmem>>, vector<1x1x8x8xbf16>
    %5 = vector.shape_cast %4 : vector<1x1x8x8xbf16> to vector<8x8xbf16>
    %cst = arith.constant dense<0.000000e+00> : vector<8x8xf32>
    %6 = tpu.matmul %1, %3, %cst {dimension_numbers = #tpu.dot_dimension_numbers<[1], [1], [0], [0], [0, 0, 1, 0], [], []>} : vector<8x8xbf16>, vector<8x8xbf16>, vector<8x8xf32> -> vector<8x8xf32>
    %7 = tpu.iota {dimensions = array<i32: 0>} : vector<8x8xi32>
    %c8_i32 = arith.constant 8 : i32
    %8 = arith.muli %arg2, %c8_i32 : i32
    %9 = vector.broadcast %8 : i32 to vector<8x8xi32>
    %10 = arith.addi %7, %9 : vector<8x8xi32>
    %11 = tpu.iota {dimensions = array<i32: 1>} : vector<8x8xi32>
    %12 = arith.cmpi sgt, %11, %10 : vector<8x8xi32>
    %cst_11 = arith.constant -1.000000e+30 : f32
    %13 = vector.broadcast %cst_11 : f32 to vector<8x8xf32>
    %14 = arith.select %12, %13, %6 : vector<8x8xi1>, vector<8x8xf32>
    %cst_12 = arith.constant dense<0xFF800000> : vector<8xf32>
    %15 = vector.multi_reduction <maximumf>, %14, %cst_12 [1] : vector<8x8xf32> to vector<8xf32>
    %16 = vector.shape_cast %15 : vector<8xf32> to vector<8x1xf32>
    %17 = vector.broadcast %16 : vector<8x1xf32> to vector<8x8xf32>
    %18 = arith.subf %14, %17 : vector<8x8xf32>
    %19 = math.exp %18 : vector<8x8xf32>
    %cst_13 = arith.constant dense<0.000000e+00> : vector<8xf32>
    %20 = vector.multi_reduction <add>, %19, %cst_13 [1] : vector<8x8xf32> to vector<8xf32>
    %21 = vector.shape_cast %20 : vector<8xf32> to vector<8x1xf32>
    %22 = tpu.reciprocal %21 : vector<8x1xf32> -> vector<8x1xf32>
    %23 = vector.broadcast %22 : vector<8x1xf32> to vector<8x8xf32>
    %24 = arith.mulf %19, %23 : vector<8x8xf32>
    %25 = arith.truncf %24 : vector<8x8xf32> to vector<8x8xbf16>
    %cst_14 = arith.constant dense<0.000000e+00> : vector<8x8xf32>
    %26 = tpu.matmul %25, %5, %cst_14 {dimension_numbers = #tpu.dot_dimension_numbers<[1], [0], [0], [1], [0, 0, 1, 1], [], []>} : vector<8x8xbf16>, vector<8x8xbf16>, vector<8x8xf32> -> vector<8x8xf32>
    %27 = arith.truncf %26 : vector<8x8xf32> to vector<8x8xbf16>
    %c0_15 = arith.constant 0 : index
    %c0_16 = arith.constant 0 : index
    %c0_17 = arith.constant 0 : index
    %c0_18 = arith.constant 0 : index
    %28 = vector.load %arg6[%c0_15, %c0_16, %c0_17, %c0_18] : memref<1x1x8x8xbf16, #tpu.memory_space<vmem>>, vector<1x1x8x8xbf16>
    %29 = vector.shape_cast %28 : vector<1x1x8x8xbf16> to vector<8x8xbf16>
    %30 = vector.shape_cast %27 : vector<8x8xbf16> to vector<1x1x8x8xbf16>
    tpu.vector_store %arg6[%c0_15, %c0_16, %c0_17, %c0_18], %30 {strides = array<i32>} : memref<1x1x8x8xbf16, #tpu.memory_space<vmem>>, vector<1x1x8x8xbf16>,
    return
  }
  func.func @transform_0(%arg0: i32, %arg1: i32, %arg2: i32) -> (i32, i32, i32, i32) {
    %c0_i32 = arith.constant 0 : i32
    %c0_i32_0 = arith.constant 0 : i32
    return %arg0, %arg1, %arg2, %c0_i32 : i32, i32, i32, i32
  }
  func.func @transform_1(%arg0: i32, %arg1: i32, %arg2: i32) -> (i32, i32, i32, i32) {
    %c4_i32 = arith.constant 4 : i32
    %0 = arith.addi %c4_i32, %arg1 : i32
    %c0_i32 = arith.constant 0 : i32
    %c0_i32_0 = arith.constant 0 : i32
    %c0_i32_1 = arith.constant 0 : i32
    return %arg0, %0, %c0_i32, %c0_i32_0 : i32, i32, i32, i32
  }
  func.func @transform_2(%arg0: i32, %arg1: i32, %arg2: i32) -> (i32, i32, i32, i32) {
    %c8_i32 = arith.constant 8 : i32
    %0 = arith.addi %c8_i32, %arg1 : i32
    %c0_i32 = arith.constant 0 : i32
    %c0_i32_0 = arith.constant 0 : i32
    %c0_i32_1 = arith.constant 0 : i32
    return %arg0, %0, %c0_i32, %c0_i32_0 : i32, i32, i32, i32
  }
  func.func @transform_3(%arg0: i32, %arg1: i32, %arg2: i32) -> (i32, i32, i32, i32) {
    %c0_i32 = arith.constant 0 : i32
    %c0_i32_0 = arith.constant 0 : i32
    return %arg0, %arg1, %arg2, %c0_i32 : i32, i32, i32, i32
  }
}

module attributes {stable_mosaic.version = 11 : i64} {
  func.func @_post_attn_kernel(%arg0: i32, %arg1: memref<8x32xbf16, #tpu.memory_space<vmem>>, %arg2: memref<8x32xbf16, #tpu.memory_space<vmem>>, %arg3: memref<32x32xbf16, #tpu.memory_space<vmem>>, %arg4: memref<1x32xf32, #tpu.memory_space<vmem>>, %arg5: memref<1x32xf32, #tpu.memory_space<vmem>>, %arg6: memref<1x32xf32, #tpu.memory_space<vmem>>, %arg7: memref<64x32xbf16, #tpu.memory_space<vmem>>, %arg8: memref<1x64xf32, #tpu.memory_space<vmem>>, %arg9: memref<32x64xbf16, #tpu.memory_space<vmem>>, %arg10: memref<1x32xf32, #tpu.memory_space<vmem>>, %arg11: memref<1x32xf32, #tpu.memory_space<vmem>>, %arg12: memref<1x32xf32, #tpu.memory_space<vmem>>, %arg13: memref<8x32xbf16, #tpu.memory_space<vmem>>) attributes {dimension_semantics = [#tpu.dimension_semantics<parallel>], iteration_bounds = array<i64: 2>, scalar_prefetch = 0 : i64, scratch_operands = 0 : i64, tpu.core_type = #tpu.core_type<tc>, window_params = [{transform_indices = @transform_0, window_bounds = array<i64: 8, 32>}, {transform_indices = @transform_1, window_bounds = array<i64: 8, 32>}, {pipeline_mode = #tpu.pipeline_mode<synchronous>, transform_indices = @transform_2, window_bounds = array<i64: 32, 32>}, {pipeline_mode = #tpu.pipeline_mode<synchronous>, transform_indices = @transform_3, window_bounds = array<i64: 1, 32>}, {pipeline_mode = #tpu.pipeline_mode<synchronous>, transform_indices = @transform_4, window_bounds = array<i64: 1, 32>}, {pipeline_mode = #tpu.pipeline_mode<synchronous>, transform_indices = @transform_5, window_bounds = array<i64: 1, 32>}, {pipeline_mode = #tpu.pipeline_mode<synchronous>, transform_indices = @transform_6, window_bounds = array<i64: 64, 32>}, {pipeline_mode = #tpu.pipeline_mode<synchronous>, transform_indices = @transform_7, window_bounds = array<i64: 1, 64>}, {pipeline_mode = #tpu.pipeline_mode<synchronous>, transform_indices = @transform_8, window_bounds = array<i64: 32, 64>}, {pipeline_mode = #tpu.pipeline_mode<synchronous>, transform_indices = @transform_9, window_bounds = array<i64: 1, 32>}, {pipeline_mode = #tpu.pipeline_mode<synchronous>, transform_indices = @transform_10, window_bounds = array<i64: 1, 32>}, {pipeline_mode = #tpu.pipeline_mode<synchronous>, transform_indices = @transform_11, window_bounds = array<i64: 1, 32>}, {transform_indices = @transform_12, window_bounds = array<i64: 8, 32>}]} {
    %c0 = arith.constant 0 : index
    %c0_0 = arith.constant 0 : index
    %0 = vector.load %arg1[%c0, %c0_0] : memref<8x32xbf16, #tpu.memory_space<vmem>>, vector<8x32xbf16>
    %c0_1 = arith.constant 0 : index
    %c0_2 = arith.constant 0 : index
    %1 = vector.load %arg3[%c0_1, %c0_2] : memref<32x32xbf16, #tpu.memory_space<vmem>>, vector<32x32xbf16>
    %cst = arith.constant dense<0.000000e+00> : vector<8x32xf32>
    %2 = tpu.matmul %0, %1, %cst {dimension_numbers = #tpu.dot_dimension_numbers<[1], [1], [0], [0], [0, 0, 1, 0], [], []>} : vector<8x32xbf16>, vector<32x32xbf16>, vector<8x32xf32> -> vector<8x32xf32>
    %c0_3 = arith.constant 0 : index
    %c0_4 = arith.constant 0 : index
    %3 = vector.load %arg4[%c0_3, %c0_4] : memref<1x32xf32, #tpu.memory_space<vmem>>, vector<1x32xf32>
    %4 = vector.broadcast %3 : vector<1x32xf32> to vector<8x32xf32>
    %5 = arith.addf %2, %4 : vector<8x32xf32>
    %c0_5 = arith.constant 0 : index
    %c0_6 = arith.constant 0 : index
    %6 = vector.load %arg2[%c0_5, %c0_6] : memref<8x32xbf16, #tpu.memory_space<vmem>>, vector<8x32xbf16>
    %7 = arith.extf %6 : vector<8x32xbf16> to vector<8x32xf32>
    %8 = arith.addf %7, %5 : vector<8x32xf32>
    %c0_7 = arith.constant 0 : index
    %c0_8 = arith.constant 0 : index
    %9 = vector.load %arg5[%c0_7, %c0_8] : memref<1x32xf32, #tpu.memory_space<vmem>>, vector<1x32xf32>
    %c0_9 = arith.constant 0 : index
    %c0_10 = arith.constant 0 : index
    %10 = vector.load %arg6[%c0_9, %c0_10] : memref<1x32xf32, #tpu.memory_space<vmem>>, vector<1x32xf32>
    %cst_11 = arith.constant dense<0.000000e+00> : vector<8xf32>
    %11 = vector.multi_reduction <add>, %8, %cst_11 [1] : vector<8x32xf32> to vector<8xf32>
    %12 = vector.shape_cast %11 : vector<8xf32> to vector<8x1xf32>
    %cst_12 = arith.constant 3.200000e+01 : f32
    %13 = vector.broadcast %cst_12 : f32 to vector<8x1xf32>
    %14 = arith.divf %12, %13 : vector<8x1xf32>
    %15 = vector.broadcast %14 : vector<8x1xf32> to vector<8x32xf32>
    %16 = arith.subf %8, %15 : vector<8x32xf32>
    %17 = arith.mulf %16, %16 : vector<8x32xf32>
    %cst_13 = arith.constant dense<0.000000e+00> : vector<8xf32>
    %18 = vector.multi_reduction <add>, %17, %cst_13 [1] : vector<8x32xf32> to vector<8xf32>
    %19 = vector.shape_cast %18 : vector<8xf32> to vector<8x1xf32>
    %cst_14 = arith.constant 3.200000e+01 : f32
    %20 = vector.broadcast %cst_14 : f32 to vector<8x1xf32>
    %21 = arith.divf %19, %20 : vector<8x1xf32>
    %22 = vector.broadcast %14 : vector<8x1xf32> to vector<8x32xf32>
    %23 = arith.subf %8, %22 : vector<8x32xf32>
    %cst_15 = arith.constant 9.99999974E-6 : f32
    %24 = vector.broadcast %cst_15 : f32 to vector<8x1xf32>
    %25 = arith.addf %21, %24 : vector<8x1xf32>
    %26 = math.rsqrt %25 : vector<8x1xf32>
    %27 = vector.broadcast %26 : vector<8x1xf32> to vector<8x32xf32>
    %28 = arith.mulf %23, %27 : vector<8x32xf32>
    %29 = vector.broadcast %9 : vector<1x32xf32> to vector<8x32xf32>
    %30 = arith.mulf %28, %29 : vector<8x32xf32>
    %31 = vector.broadcast %10 : vector<1x32xf32> to vector<8x32xf32>
    %32 = arith.addf %30, %31 : vector<8x32xf32>
    %c0_16 = arith.constant 0 : index
    %c0_17 = arith.constant 0 : index
    %33 = vector.load %arg7[%c0_16, %c0_17] : memref<64x32xbf16, #tpu.memory_space<vmem>>, vector<64x32xbf16>
    %34 = arith.truncf %32 : vector<8x32xf32> to vector<8x32xbf16>
    %cst_18 = arith.constant dense<0.000000e+00> : vector<8x64xf32>
    %35 = tpu.matmul %34, %33, %cst_18 {dimension_numbers = #tpu.dot_dimension_numbers<[1], [1], [0], [0], [0, 0, 1, 0], [], []>} : vector<8x32xbf16>, vector<64x32xbf16>, vector<8x64xf32> -> vector<8x64xf32>
    %c0_19 = arith.constant 0 : index
    %c0_20 = arith.constant 0 : index
    %36 = vector.load %arg8[%c0_19, %c0_20] : memref<1x64xf32, #tpu.memory_space<vmem>>, vector<1x64xf32>
    %37 = vector.broadcast %36 : vector<1x64xf32> to vector<8x64xf32>
    %38 = arith.addf %35, %37 : vector<8x64xf32>
    %cst_21 = arith.constant 0.000000e+00 : f32
    %39 = vector.broadcast %cst_21 : f32 to vector<8x64xf32>
    %40 = arith.maximumf %38, %39 : vector<8x64xf32>
    %c0_22 = arith.constant 0 : index
    %c0_23 = arith.constant 0 : index
    %41 = vector.load %arg9[%c0_22, %c0_23] : memref<32x64xbf16, #tpu.memory_space<vmem>>, vector<32x64xbf16>
    %42 = arith.truncf %40 : vector<8x64xf32> to vector<8x64xbf16>
    %cst_24 = arith.constant dense<0.000000e+00> : vector<8x32xf32>
    %43 = tpu.matmul %42, %41, %cst_24 {dimension_numbers = #tpu.dot_dimension_numbers<[1], [1], [0], [0], [0, 0, 1, 0], [], []>} : vector<8x64xbf16>, vector<32x64xbf16>, vector<8x32xf32> -> vector<8x32xf32>
    %c0_25 = arith.constant 0 : index
    %c0_26 = arith.constant 0 : index
    %44 = vector.load %arg10[%c0_25, %c0_26] : memref<1x32xf32, #tpu.memory_space<vmem>>, vector<1x32xf32>
    %45 = vector.broadcast %44 : vector<1x32xf32> to vector<8x32xf32>
    %46 = arith.addf %43, %45 : vector<8x32xf32>
    %47 = arith.addf %32, %46 : vector<8x32xf32>
    %c0_27 = arith.constant 0 : index
    %c0_28 = arith.constant 0 : index
    %48 = vector.load %arg11[%c0_27, %c0_28] : memref<1x32xf32, #tpu.memory_space<vmem>>, vector<1x32xf32>
    %c0_29 = arith.constant 0 : index
    %c0_30 = arith.constant 0 : index
    %49 = vector.load %arg12[%c0_29, %c0_30] : memref<1x32xf32, #tpu.memory_space<vmem>>, vector<1x32xf32>
    %cst_31 = arith.constant dense<0.000000e+00> : vector<8xf32>
    %50 = vector.multi_reduction <add>, %47, %cst_31 [1] : vector<8x32xf32> to vector<8xf32>
    %51 = vector.shape_cast %50 : vector<8xf32> to vector<8x1xf32>
    %cst_32 = arith.constant 3.200000e+01 : f32
    %52 = vector.broadcast %cst_32 : f32 to vector<8x1xf32>
    %53 = arith.divf %51, %52 : vector<8x1xf32>
    %54 = vector.broadcast %53 : vector<8x1xf32> to vector<8x32xf32>
    %55 = arith.subf %47, %54 : vector<8x32xf32>
    %56 = arith.mulf %55, %55 : vector<8x32xf32>
    %cst_33 = arith.constant dense<0.000000e+00> : vector<8xf32>
    %57 = vector.multi_reduction <add>, %56, %cst_33 [1] : vector<8x32xf32> to vector<8xf32>
    %58 = vector.shape_cast %57 : vector<8xf32> to vector<8x1xf32>
    %cst_34 = arith.constant 3.200000e+01 : f32
    %59 = vector.broadcast %cst_34 : f32 to vector<8x1xf32>
    %60 = arith.divf %58, %59 : vector<8x1xf32>
    %61 = vector.broadcast %53 : vector<8x1xf32> to vector<8x32xf32>
    %62 = arith.subf %47, %61 : vector<8x32xf32>
    %cst_35 = arith.constant 9.99999974E-6 : f32
    %63 = vector.broadcast %cst_35 : f32 to vector<8x1xf32>
    %64 = arith.addf %60, %63 : vector<8x1xf32>
    %65 = math.rsqrt %64 : vector<8x1xf32>
    %66 = vector.broadcast %65 : vector<8x1xf32> to vector<8x32xf32>
    %67 = arith.mulf %62, %66 : vector<8x32xf32>
    %68 = vector.broadcast %48 : vector<1x32xf32> to vector<8x32xf32>
    %69 = arith.mulf %67, %68 : vector<8x32xf32>
    %70 = vector.broadcast %49 : vector<1x32xf32> to vector<8x32xf32>
    %71 = arith.addf %69, %70 : vector<8x32xf32>
    %72 = arith.truncf %71 : vector<8x32xf32> to vector<8x32xbf16>
    %c0_36 = arith.constant 0 : index
    %c0_37 = arith.constant 0 : index
    %73 = vector.load %arg13[%c0_36, %c0_37] : memref<8x32xbf16, #tpu.memory_space<vmem>>, vector<8x32xbf16>
    tpu.vector_store %arg13[%c0_36, %c0_37], %72 {strides = array<i32>} : memref<8x32xbf16, #tpu.memory_space<vmem>>, vector<8x32xbf16>,
    return
  }
  func.func @transform_0(%arg0: i32) -> (i32, i32) {
    %c0_i32 = arith.constant 0 : i32
    %c0_i32_0 = arith.constant 0 : i32
    return %arg0, %c0_i32 : i32, i32
  }
  func.func @transform_1(%arg0: i32) -> (i32, i32) {
    %c0_i32 = arith.constant 0 : i32
    %c0_i32_0 = arith.constant 0 : i32
    return %arg0, %c0_i32 : i32, i32
  }
  func.func @transform_2(%arg0: i32) -> (i32, i32) {
    %c0_i32 = arith.constant 0 : i32
    %c0_i32_0 = arith.constant 0 : i32
    %c0_i32_1 = arith.constant 0 : i32
    return %c0_i32, %c0_i32_0 : i32, i32
  }
  func.func @transform_3(%arg0: i32) -> (i32, i32) {
    %c0_i32 = arith.constant 0 : i32
    %c0_i32_0 = arith.constant 0 : i32
    %c0_i32_1 = arith.constant 0 : i32
    return %c0_i32, %c0_i32_0 : i32, i32
  }
  func.func @transform_4(%arg0: i32) -> (i32, i32) {
    %c0_i32 = arith.constant 0 : i32
    %c0_i32_0 = arith.constant 0 : i32
    %c0_i32_1 = arith.constant 0 : i32
    return %c0_i32, %c0_i32_0 : i32, i32
  }
  func.func @transform_5(%arg0: i32) -> (i32, i32) {
    %c0_i32 = arith.constant 0 : i32
    %c0_i32_0 = arith.constant 0 : i32
    %c0_i32_1 = arith.constant 0 : i32
    return %c0_i32, %c0_i32_0 : i32, i32
  }
  func.func @transform_6(%arg0: i32) -> (i32, i32) {
    %c0_i32 = arith.constant 0 : i32
    %c0_i32_0 = arith.constant 0 : i32
    %c0_i32_1 = arith.constant 0 : i32
    return %c0_i32, %c0_i32_0 : i32, i32
  }
  func.func @transform_7(%arg0: i32) -> (i32, i32) {
    %c0_i32 = arith.constant 0 : i32
    %c0_i32_0 = arith.constant 0 : i32
    %c0_i32_1 = arith.constant 0 : i32
    return %c0_i32, %c0_i32_0 : i32, i32
  }
  func.func @transform_8(%arg0: i32) -> (i32, i32) {
    %c0_i32 = arith.constant 0 : i32
    %c0_i32_0 = arith.constant 0 : i32
    %c0_i32_1 = arith.constant 0 : i32
    return %c0_i32, %c0_i32_0 : i32, i32
  }
  func.func @transform_9(%arg0: i32) -> (i32, i32) {
    %c0_i32 = arith.constant 0 : i32
    %c0_i32_0 = arith.constant 0 : i32
    %c0_i32_1 = arith.constant 0 : i32
    return %c0_i32, %c0_i32_0 : i32, i32
  }
  func.func @transform_10(%arg0: i32) -> (i32, i32) {
    %c0_i32 = arith.constant 0 : i32
    %c0_i32_0 = arith.constant 0 : i32
    %c0_i32_1 = arith.constant 0 : i32
    return %c0_i32, %c0_i32_0 : i32, i32
  }
  func.func @transform_11(%arg0: i32) -> (i32, i32) {
    %c0_i32 = arith.constant 0 : i32
    %c0_i32_0 = arith.constant 0 : i32
    %c0_i32_1 = arith.constant 0 : i32
    return %c0_i32, %c0_i32_0 : i32, i32
  }
  func.func @transform_12(%arg0: i32) -> (i32, i32) {
    %c0_i32 = arith.constant 0 : i32
    %c0_i32_0 = arith.constant 0 : i32
    return %arg0, %c0_i32 : i32, i32
  }
}

module attributes {stable_mosaic.version = 11 : i64} {
  func.func @_decoder_kernel(%arg0: i32, %arg1: memref<8x32xbf16, #tpu.memory_space<vmem>>, %arg2: memref<1x32xf32, #tpu.memory_space<vmem>>, %arg3: memref<1x32xf32, #tpu.memory_space<vmem>>, %arg4: memref<50x32xbf16, #tpu.memory_space<vmem>>, %arg5: memref<1x50xf32, #tpu.memory_space<vmem>>, %arg6: memref<8x50xf32, #tpu.memory_space<vmem>>) attributes {dimension_semantics = [#tpu.dimension_semantics<parallel>], iteration_bounds = array<i64: 2>, scalar_prefetch = 0 : i64, scratch_operands = 0 : i64, tpu.core_type = #tpu.core_type<tc>, window_params = [{transform_indices = @transform_0, window_bounds = array<i64: 8, 32>}, {pipeline_mode = #tpu.pipeline_mode<synchronous>, transform_indices = @transform_1, window_bounds = array<i64: 1, 32>}, {pipeline_mode = #tpu.pipeline_mode<synchronous>, transform_indices = @transform_2, window_bounds = array<i64: 1, 32>}, {pipeline_mode = #tpu.pipeline_mode<synchronous>, transform_indices = @transform_3, window_bounds = array<i64: 50, 32>}, {pipeline_mode = #tpu.pipeline_mode<synchronous>, transform_indices = @transform_4, window_bounds = array<i64: 1, 50>}, {transform_indices = @transform_5, window_bounds = array<i64: 8, 50>}]} {
    %c0 = arith.constant 0 : index
    %c0_0 = arith.constant 0 : index
    %0 = vector.load %arg1[%c0, %c0_0] : memref<8x32xbf16, #tpu.memory_space<vmem>>, vector<8x32xbf16>
    %1 = arith.extf %0 : vector<8x32xbf16> to vector<8x32xf32>
    %c0_1 = arith.constant 0 : index
    %c0_2 = arith.constant 0 : index
    %2 = vector.load %arg2[%c0_1, %c0_2] : memref<1x32xf32, #tpu.memory_space<vmem>>, vector<1x32xf32>
    %c0_3 = arith.constant 0 : index
    %c0_4 = arith.constant 0 : index
    %3 = vector.load %arg3[%c0_3, %c0_4] : memref<1x32xf32, #tpu.memory_space<vmem>>, vector<1x32xf32>
    %cst = arith.constant dense<0.000000e+00> : vector<8xf32>
    %4 = vector.multi_reduction <add>, %1, %cst [1] : vector<8x32xf32> to vector<8xf32>
    %5 = vector.shape_cast %4 : vector<8xf32> to vector<8x1xf32>
    %cst_5 = arith.constant 3.200000e+01 : f32
    %6 = vector.broadcast %cst_5 : f32 to vector<8x1xf32>
    %7 = arith.divf %5, %6 : vector<8x1xf32>
    %8 = vector.broadcast %7 : vector<8x1xf32> to vector<8x32xf32>
    %9 = arith.subf %1, %8 : vector<8x32xf32>
    %10 = arith.mulf %9, %9 : vector<8x32xf32>
    %cst_6 = arith.constant dense<0.000000e+00> : vector<8xf32>
    %11 = vector.multi_reduction <add>, %10, %cst_6 [1] : vector<8x32xf32> to vector<8xf32>
    %12 = vector.shape_cast %11 : vector<8xf32> to vector<8x1xf32>
    %cst_7 = arith.constant 3.200000e+01 : f32
    %13 = vector.broadcast %cst_7 : f32 to vector<8x1xf32>
    %14 = arith.divf %12, %13 : vector<8x1xf32>
    %15 = vector.broadcast %7 : vector<8x1xf32> to vector<8x32xf32>
    %16 = arith.subf %1, %15 : vector<8x32xf32>
    %cst_8 = arith.constant 9.99999974E-6 : f32
    %17 = vector.broadcast %cst_8 : f32 to vector<8x1xf32>
    %18 = arith.addf %14, %17 : vector<8x1xf32>
    %19 = math.rsqrt %18 : vector<8x1xf32>
    %20 = vector.broadcast %19 : vector<8x1xf32> to vector<8x32xf32>
    %21 = arith.mulf %16, %20 : vector<8x32xf32>
    %22 = vector.broadcast %2 : vector<1x32xf32> to vector<8x32xf32>
    %23 = arith.mulf %21, %22 : vector<8x32xf32>
    %24 = vector.broadcast %3 : vector<1x32xf32> to vector<8x32xf32>
    %25 = arith.addf %23, %24 : vector<8x32xf32>
    %c0_9 = arith.constant 0 : index
    %c0_10 = arith.constant 0 : index
    %26 = vector.load %arg4[%c0_9, %c0_10] : memref<50x32xbf16, #tpu.memory_space<vmem>>, vector<50x32xbf16>
    %27 = arith.truncf %25 : vector<8x32xf32> to vector<8x32xbf16>
    %cst_11 = arith.constant dense<0.000000e+00> : vector<8x50xf32>
    %28 = tpu.matmul %27, %26, %cst_11 {dimension_numbers = #tpu.dot_dimension_numbers<[1], [1], [0], [0], [0, 0, 1, 0], [], []>} : vector<8x32xbf16>, vector<50x32xbf16>, vector<8x50xf32> -> vector<8x50xf32>
    %c0_12 = arith.constant 0 : index
    %c0_13 = arith.constant 0 : index
    %29 = vector.load %arg5[%c0_12, %c0_13] : memref<1x50xf32, #tpu.memory_space<vmem>>, vector<1x50xf32>
    %30 = vector.broadcast %29 : vector<1x50xf32> to vector<8x50xf32>
    %31 = arith.addf %28, %30 : vector<8x50xf32>
    %cst_14 = arith.constant dense<0xFF800000> : vector<8xf32>
    %32 = vector.multi_reduction <maximumf>, %31, %cst_14 [1] : vector<8x50xf32> to vector<8xf32>
    %33 = vector.shape_cast %32 : vector<8xf32> to vector<8x1xf32>
    %34 = vector.broadcast %33 : vector<8x1xf32> to vector<8x50xf32>
    %35 = arith.subf %31, %34 : vector<8x50xf32>
    %36 = math.exp %35 : vector<8x50xf32>
    %cst_15 = arith.constant dense<0.000000e+00> : vector<8xf32>
    %37 = vector.multi_reduction <add>, %36, %cst_15 [1] : vector<8x50xf32> to vector<8xf32>
    %38 = vector.shape_cast %37 : vector<8xf32> to vector<8x1xf32>
    %39 = math.log %38 : vector<8x1xf32>
    %40 = vector.broadcast %39 : vector<8x1xf32> to vector<8x50xf32>
    %41 = arith.subf %35, %40 : vector<8x50xf32>
    %c0_16 = arith.constant 0 : index
    %c0_17 = arith.constant 0 : index
    %42 = vector.load %arg6[%c0_16, %c0_17] : memref<8x50xf32, #tpu.memory_space<vmem>>, vector<8x50xf32>
    tpu.vector_store %arg6[%c0_16, %c0_17], %41 {strides = array<i32>} : memref<8x50xf32, #tpu.memory_space<vmem>>, vector<8x50xf32>,
    return
  }
  func.func @transform_0(%arg0: i32) -> (i32, i32) {
    %c0_i32 = arith.constant 0 : i32
    %c0_i32_0 = arith.constant 0 : i32
    return %arg0, %c0_i32 : i32, i32
  }
  func.func @transform_1(%arg0: i32) -> (i32, i32) {
    %c0_i32 = arith.constant 0 : i32
    %c0_i32_0 = arith.constant 0 : i32
    %c0_i32_1 = arith.constant 0 : i32
    return %c0_i32, %c0_i32_0 : i32, i32
  }
  func.func @transform_2(%arg0: i32) -> (i32, i32) {
    %c0_i32 = arith.constant 0 : i32
    %c0_i32_0 = arith.constant 0 : i32
    %c0_i32_1 = arith.constant 0 : i32
    return %c0_i32, %c0_i32_0 : i32, i32
  }
  func.func @transform_3(%arg0: i32) -> (i32, i32) {
    %c0_i32 = arith.constant 0 : i32
    %c0_i32_0 = arith.constant 0 : i32
    %c0_i32_1 = arith.constant 0 : i32
    return %c0_i32, %c0_i32_0 : i32, i32
  }
  func.func @transform_4(%arg0: i32) -> (i32, i32) {
    %c0_i32 = arith.constant 0 : i32
    %c0_i32_0 = arith.constant 0 : i32
    %c0_i32_1 = arith.constant 0 : i32
    return %c0_i32, %c0_i32_0 : i32, i32
  }
  func.func @transform_5(%arg0: i32) -> (i32, i32) {
    %c0_i32 = arith.constant 0 : i32
    %c0_i32_0 = arith.constant 0 : i32
    return %arg0, %c0_i32 : i32, i32
  }
}

</mosaic_0001>

<llo_original>
// kernel: transformer_forward.8
$region0: #{transformer_forward.8}
  #allocation0 [shape = 'u32[]', space=smem, size = 0x4, offset = 0x4, fixed_abs, tag = 'smem constant byte address 0x4 - core index']
  #allocation1 [shape = 'u32[144,128]{1,0:T(1,128)}', space=vmem, size = 0x12000, scoped, tag = 'internal scratch']
  %s0 = inlined_call_operand.vmem [shape: bf16[8,2,32], index: 0, kind: input, shape index: {}]
  %s1 = inlined_call_operand.vmem [shape: f32[8,1,32], index: 1, kind: input, shape index: {}]
  %s2 = inlined_call_operand.vmem [shape: bf16[8,2,32], index: 2, kind: output, shape index: {}]
  %s3 = sld [smem:[#allocation0]]
  $region41: #{transformer_forward.8} parent=0
    _
  %s5 = ssub.s32 1, %s3
  %s6 = scalar_select 0, %s5, %s3
  loop: start=0, step=1, limit=4
  $region2: #{transformer_forward.8} parent=0 // loop_pre_header
    _
  $region3: #{transformer_forward.8} parent=0 // loop_header
    %s8 = sphi 0, %s12
    %p9 = scmp.ge.s32.totalorder %s8, 4
    %s18 = sphi 0, %s20
    %s21 = sphi 0, %s18
    %s22 = sphi 0, %s21
    %s38 = sphi 0, %s22
    %s44 = sphi 0, %s46
    %s47 = sphi 0, %s44
    %s48 = sphi 0, %s47
    %s64 = sphi 0, %s48
    %s70 = sphi 0, %s72
    %s73 = sphi 0, %s70
    %s74 = sphi 0, %s73
    %s90 = sphi 0, %s74
  $region4: #{transformer_forward.8} parent=0 // loop_header_branch
    %11 = sbr.rel (%p9) target = $region8
  $region5: #{transformer_forward.8} parent=0 // loop_body
    %s13 = ssub.s32 %s8, 1
    %s14 = ssub.s32 %s8, 2
    %s15 = sadd.s32 %s8, 1
    %s16 = ssub.s32 %s8, %s15
    %p17 = scmp.eq.s32.totalorder %s16, 0
    %s19 = sadd.s32 %s18, 1
    %s20 = scalar_select %p17, %s18, %s19
    %p23 = pneg %p17
    %p24 = scmp.eq.s32.totalorder %s8, 1
    %p25 = por %p23, %p24
    %p26 = scmp.ne.s32.totalorder %s18, %s21
    %p27 = scmp.eq.s32.totalorder %s8, 0
    %p28 = por %p26, %p27
    %p29 = scmp.ne.s32.totalorder %s18, %s21
    %p30 = scmp.eq.s32.totalorder %s13, 1
    %p31 = por %p29, %p30
    %p32 = scmp.ne.s32.totalorder %s21, %s22
    %p33 = scmp.eq.s32.totalorder %s13, 0
    %p34 = por %p32, %p33
    %p35 = scmp.ne.s32.totalorder %s21, %s22
    %p36 = scmp.eq.s32.totalorder %s14, 1
    %p37 = por %p35, %p36
    %p39 = scmp.ne.s32.totalorder %s22, %s38
    %p40 = scmp.eq.s32.totalorder %s14, 0
    %p41 = por %p39, %p40
    %s42 = ssub.s32 %s8, %s15
    %p43 = scmp.eq.s32.totalorder %s42, 0
    %s45 = sadd.s32 %s44, 1
    %s46 = scalar_select %p43, %s44, %s45
    %p49 = pneg %p43
    %p50 = scmp.eq.s32.totalorder %s8, 1
    %p51 = por %p49, %p50
    %p52 = scmp.ne.s32.totalorder %s44, %s47
    %p53 = scmp.eq.s32.totalorder %s8, 0
    %p54 = por %p52, %p53
    %p55 = scmp.ne.s32.totalorder %s44, %s47
    %p56 = scmp.eq.s32.totalorder %s13, 1
    %p57 = por %p55, %p56
    %p58 = scmp.ne.s32.totalorder %s47, %s48
    %p59 = scmp.eq.s32.totalorder %s13, 0
    %p60 = por %p58, %p59
    %p61 = scmp.ne.s32.totalorder %s47, %s48
    %p62 = scmp.eq.s32.totalorder %s14, 1
    %p63 = por %p61, %p62
    %p65 = scmp.ne.s32.totalorder %s48, %s64
    %p66 = scmp.eq.s32.totalorder %s14, 0
    %p67 = por %p65, %p66
    %s68 = ssub.s32 %s8, %s15
    %p69 = scmp.eq.s32.totalorder %s68, 0
    %s71 = sadd.s32 %s70, 1
    %s72 = scalar_select %p69, %s70, %s71
    %p75 = pneg %p69
    %p76 = scmp.eq.s32.totalorder %s8, 1
    %p77 = por %p75, %p76
    %p78 = scmp.ne.s32.totalorder %s70, %s73
    %p79 = scmp.eq.s32.totalorder %s8, 0
    %p80 = por %p78, %p79
    %p81 = scmp.ne.s32.totalorder %s70, %s73
    %p82 = scmp.eq.s32.totalorder %s13, 1
    %p83 = por %p81, %p82
    %p84 = scmp.ne.s32.totalorder %s73, %s74
    %p85 = scmp.eq.s32.totalorder %s13, 0
    %p86 = por %p84, %p85
    %p87 = scmp.ne.s32.totalorder %s73, %s74
    %p88 = scmp.eq.s32.totalorder %s14, 1
    %p89 = por %p87, %p88
    %p91 = scmp.ne.s32.totalorder %s74, %s90
    %p92 = scmp.eq.s32.totalorder %s14, 0
    %p93 = por %p91, %p92
    %p94 = scmp.le.s32.totalorder 1, %s8
    %p95 = scmp.lt.s32.totalorder %s8, 3
    %p96 = pnand %p94, %p95
    %p97 = pneg %p96
    // Predicated region
    $region9: #{transformer_forward.8} parent=5 // pred_check
      _
    $region10: #{transformer_forward.8} parent=5 // pred_check_branch
      %99 = sbr.rel (%p96) target = $region12
    $region11: #{transformer_forward.8} parent=5 // pred_region
      %s100 = ssub.s32 %s8, 1
    $region12: #{transformer_forward.8} parent=5 // pred_fallthru
      _
    %p101 = scmp.lt.s32.totalorder %s8, 2
    // Predicated region
    $region13: #{transformer_forward.8} parent=5 // pred_check
      %p102 = pneg %p101
    $region14: #{transformer_forward.8} parent=5 // pred_check_branch
      %104 = sbr.rel (%p102) target = $region16
    $region15: #{transformer_forward.8} parent=5 // pred_region
      // Predicated region
      $region17: #{transformer_forward.8} parent=15 // pred_check
        %p105 = pneg %p28
      $region18: #{transformer_forward.8} parent=15 // pred_check_branch
        %107 = sbr.rel (%p105) target = $region20
      $region19: #{transformer_forward.8} parent=15 // pred_region
        %s108 = smul.u32 4, %s8
        %p109 = scmp.lt.s32.totalorder %s108, 7
        %s110 = scalar_select %p109, %s108, 7
        %s111 = scalar_lea.vmem %s0, %s110
        %s112 = smul.u32 4, %s8
      $region20: #{transformer_forward.8} parent=15 // pred_fallthru
        _
      // Predicated region
      $region21: #{transformer_forward.8} parent=15 // pred_check
        %p113 = pneg %p54
      $region22: #{transformer_forward.8} parent=15 // pred_check_branch
        %115 = sbr.rel (%p113) target = $region24
      $region23: #{transformer_forward.8} parent=15 // pred_region
        %s116 = smul.u32 4, %s8
        %p117 = scmp.lt.s32.totalorder %s116, 7
        %s118 = scalar_select %p117, %s116, 7
        %s119 = scalar_lea.vmem %s1, %s118
        %s120 = smul.u32 4, %s8
      $region24: #{transformer_forward.8} parent=15 // pred_fallthru
        _
    $region16: #{transformer_forward.8} parent=5 // pred_fallthru
      _
    %p121 = scmp.le.s32.totalorder 1, %s8
    %p122 = scmp.lt.s32.totalorder %s8, 3
    %p123 = pnand %p121, %p122
    %p124 = pneg %p123
    // Predicated region
    $region25: #{transformer_forward.8} parent=5 // pred_check
      _
    $region26: #{transformer_forward.8} parent=5 // pred_check_branch
      %126 = sbr.rel (%p123) target = $region28
    $region27: #{transformer_forward.8} parent=5 // pred_region
      %s127 = ssub.s32 %s8, 1
      %s128 = smul.u32 4, %s13
      %p129 = scmp.lt.s32.totalorder %s128, 7
      %s130 = scalar_select %p129, %s128, 7
      %s131 = scalar_lea.vmem %s0, %s130
      %p132 = pneg %p34
      %p133 = pneg %p31
      %s134 = smul.u32 4, %s13
      %p135 = scmp.lt.s32.totalorder %s134, 7
      %s136 = scalar_select %p135, %s134, 7
      %s137 = scalar_lea.vmem %s1, %s136
      %p138 = pneg %p60
      %p139 = pneg %p57
      %p140 = pneg %p86
      %p141 = pneg %p83
      %s142 = smul.u32 4, %s13
      %p143 = scmp.lt.s32.totalorder %s142, 7
      %s144 = scalar_select %p143, %s142, 7
      %s145 = scalar_lea.vmem %s2, %s144
      %s146 = smul.u32 4, %s13
      %p147 = scmp.lt.s32.totalorder %s146, 7
      %s148 = scalar_select %p147, %s146, 7
      %s149 = scalar_lea.vmem %s0, %s148
      %s150 = smul.u32 4, %s13
      %s151 = smul.u32 4, %s13
      %p152 = scmp.lt.s32.totalorder %s151, 7
      %s153 = scalar_select %p152, %s151, 7
      %s154 = scalar_lea.vmem %s1, %s153
      %s155 = smul.u32 4, %s13
      %s156 = smul.u32 4, %s13
      %p157 = scmp.lt.s32.totalorder %s156, 7
      %s158 = scalar_select %p157, %s156, 7
      %s159 = scalar_lea.vmem %s2, %s158
      %s160 = smul.u32 4, %s13
      %v161 = vld [vmem:[%s149] sm:$0x1]
      %v162 = vld [vmem:[%s149 + $0x1] sm:$0x1]
      %v163 = vld [vmem:[%s149 + $0x2] sm:$0x1]
      %v164 = vld [vmem:[%s149 + $0x3] sm:$0x1]
      %v165 = vunpack.c.l.bf16 %v161
      %v166 = vunpack.c.l.bf16 %v162
      %v167 = vunpack.c.l.bf16 %v163
      %v168 = vunpack.c.l.bf16 %v164
      %v169 = vmul.f32 %v165, 5.656854
      %v170 = vmul.f32 %v166, 5.656854
      %v171 = vmul.f32 %v167, 5.656854
      %v172 = vmul.f32 %v168, 5.656854
      %v173 = vld [vmem:[%s154] sm:$0x1]
      %v174 = vld [vmem:[%s154 + $0x1] sm:$0x1]
      %v175 = vld [vmem:[%s154 + $0x2] sm:$0x1]
      %v176 = vld [vmem:[%s154 + $0x3] sm:$0x1]
      %v181 = vlaneseq
      %v182 = vshrl.u32 %v181, 7
      %v183 = vsub.s32 0, %v182
      %v184 = vrot.slane %v173, %v183
      %v185 = vlaneseq
      %v186 = vshrl.u32 %v185, 7
      %v187 = vsub.s32 0, %v186
      %v188 = vrot.slane %v174, %v187
      %v189 = vlaneseq
      %v190 = vshrl.u32 %v189, 7
      %v191 = vsub.s32 0, %v190
      %v192 = vrot.slane %v175, %v191
      %v193 = vlaneseq
      %v194 = vshrl.u32 %v193, 7
      %v195 = vsub.s32 0, %v194
      %v196 = vrot.slane %v176, %v195
      %v201 = vadd.f32 %v169, %v184
      %v202 = vadd.f32 %v170, %v188
      %v203 = vadd.f32 %v171, %v192
      %v204 = vadd.f32 %v172, %v196
      %v205 = vpack.c.bf16 %v201, %v201
      %v206 = vpack.c.bf16 %v202, %v202
      %v207 = vpack.c.bf16 %v203, %v203
      %v208 = vpack.c.bf16 %v204, %v204
      %vm209 = vcmask 253952
      %210 = vst.msk [vmem:[%s159] sm:$0x1] %vm209, %v205
      %211 = vst.msk [vmem:[%s159 + $0x1] sm:$0x1] %vm209, %v206
      %212 = vst.msk [vmem:[%s159 + $0x2] sm:$0x1] %vm209, %v207
      %213 = vst.msk [vmem:[%s159 + $0x3] sm:$0x1] %vm209, %v208
      %s214 = smul.u32 4, %s13
      %p215 = scmp.lt.s32.totalorder %s214, 7
      %s216 = scalar_select %p215, %s214, 7
      %s217 = scalar_lea.vmem %s2, %s216
      // Predicated region
      $region29: #{transformer_forward.8} parent=27 // pred_check
        %p218 = pneg %p83
      $region30: #{transformer_forward.8} parent=27 // pred_check_branch
        %220 = sbr.rel (%p218) target = $region32
      $region31: #{transformer_forward.8} parent=27 // pred_region
        %s221 = smul.u32 4, %s13
      $region32: #{transformer_forward.8} parent=27 // pred_fallthru
        _
    $region28: #{transformer_forward.8} parent=5 // pred_fallthru
      _
    %p222 = scmp.le.s32.totalorder 2, %s8
    // Predicated region
    $region33: #{transformer_forward.8} parent=5 // pred_check
      %p223 = pneg %p222
    $region34: #{transformer_forward.8} parent=5 // pred_check_branch
      %225 = sbr.rel (%p223) target = $region36
    $region35: #{transformer_forward.8} parent=5 // pred_region
      %s226 = ssub.s32 %s8, 2
      // Predicated region
      $region37: #{transformer_forward.8} parent=35 // pred_check
        %p227 = pneg %p89
      $region38: #{transformer_forward.8} parent=35 // pred_check_branch
        %229 = sbr.rel (%p227) target = $region40
      $region39: #{transformer_forward.8} parent=35 // pred_region
        %s230 = smul.u32 4, %s14
        %p231 = scmp.lt.s32.totalorder %s230, 7
        %s232 = scalar_select %p231, %s230, 7
        %s233 = scalar_lea.vmem %s2, %s232
      $region40: #{transformer_forward.8} parent=35 // pred_fallthru
        _
    $region36: #{transformer_forward.8} parent=5 // pred_fallthru
      _
  $region6: #{transformer_forward.8} parent=0 // loop_footer
    %s12 = sadd.s32 1, %s8
  $region7: #{transformer_forward.8} parent=0 // loop_footer_branch
    %7 = sbr.rel target = $region3
  $region8: #{transformer_forward.8} parent=0 // loop_exit
    _

// kernel: transformer_forward.9
$region0: #{transformer_forward.9}
  #allocation0 [shape = 'u32[]', space=smem, size = 0x4, offset = 0x4, fixed_abs, tag = 'smem constant byte address 0x4 - core index']
  #allocation1 [shape = 'u32[144,128]{1,0:T(1,128)}', space=vmem, size = 0x12000, scoped, tag = 'internal scratch']
  %s0 = inlined_call_operand.vmem [shape: bf16[16,32], index: 0, kind: input, shape index: {}]
  %s1 = inlined_call_operand.vmem [shape: bf16[96,32], index: 1, kind: input, shape index: {}]
  %s2 = inlined_call_operand.vmem [shape: f32[1,96], index: 2, kind: input, shape index: {}]
  %s3 = inlined_call_operand.vmem [shape: bf16[16,96], index: 3, kind: output, shape index: {}]
  %s4 = sld [smem:[#allocation0]]
  $region45: #{transformer_forward.9} parent=0
    _
  %s6 = ssub.s32 1, %s4
  %s7 = scalar_select 0, %s6, %s4
  loop: start=0, step=1, limit=4
  $region2: #{transformer_forward.9} parent=0 // loop_pre_header
    _
  $region3: #{transformer_forward.9} parent=0 // loop_header
    %s9 = sphi 0, %s13
    %p10 = scmp.ge.s32.totalorder %s9, 4
    %s19 = sphi 0, %s21
    %s22 = sphi 0, %s19
    %s23 = sphi 0, %s22
    %s39 = sphi 0, %s23
    %s43 = sphi 0, %s43
    %s45 = sphi 0, %s43
    %s46 = sphi 0, %s45
    %s60 = sphi 0, %s46
    %s64 = sphi 0, %s64
    %s66 = sphi 0, %s64
    %s67 = sphi 0, %s66
    %s81 = sphi 0, %s67
    %s87 = sphi 0, %s89
    %s90 = sphi 0, %s87
    %s91 = sphi 0, %s90
    %s107 = sphi 0, %s91
  $region4: #{transformer_forward.9} parent=0 // loop_header_branch
    %12 = sbr.rel (%p10) target = $region8
  $region5: #{transformer_forward.9} parent=0 // loop_body
    %s14 = ssub.s32 %s9, 1
    %s15 = ssub.s32 %s9, 2
    %s16 = sadd.s32 %s9, 1
    %s17 = ssub.s32 %s9, %s16
    %p18 = scmp.eq.s32.totalorder %s17, 0
    %s20 = sadd.s32 %s19, 1
    %s21 = scalar_select %p18, %s19, %s20
    %p24 = pneg %p18
    %p25 = scmp.eq.s32.totalorder %s9, 1
    %p26 = por %p24, %p25
    %p27 = scmp.ne.s32.totalorder %s19, %s22
    %p28 = scmp.eq.s32.totalorder %s9, 0
    %p29 = por %p27, %p28
    %p30 = scmp.ne.s32.totalorder %s19, %s22
    %p31 = scmp.eq.s32.totalorder %s14, 1
    %p32 = por %p30, %p31
    %p33 = scmp.ne.s32.totalorder %s22, %s23
    %p34 = scmp.eq.s32.totalorder %s14, 0
    %p35 = por %p33, %p34
    %p36 = scmp.ne.s32.totalorder %s22, %s23
    %p37 = scmp.eq.s32.totalorder %s15, 1
    %p38 = por %p36, %p37
    %p40 = scmp.ne.s32.totalorder %s23, %s39
    %p41 = scmp.eq.s32.totalorder %s15, 0
    %p42 = por %p40, %p41
    %s44 = sadd.s32 %s43, 1
    %p47 = scmp.eq.s32.totalorder %s9, 1
    %p48 = scmp.ne.s32.totalorder %s43, %s45
    %p49 = scmp.eq.s32.totalorder %s9, 0
    %p50 = por %p48, %p49
    %p51 = scmp.ne.s32.totalorder %s43, %s45
    %p52 = scmp.eq.s32.totalorder %s14, 1
    %p53 = por %p51, %p52
    %p54 = scmp.ne.s32.totalorder %s45, %s46
    %p55 = scmp.eq.s32.totalorder %s14, 0
    %p56 = por %p54, %p55
    %p57 = scmp.ne.s32.totalorder %s45, %s46
    %p58 = scmp.eq.s32.totalorder %s15, 1
    %p59 = por %p57, %p58
    %p61 = scmp.ne.s32.totalorder %s46, %s60
    %p62 = scmp.eq.s32.totalorder %s15, 0
    %p63 = por %p61, %p62
    %s65 = sadd.s32 %s64, 1
    %p68 = scmp.eq.s32.totalorder %s9, 1
    %p69 = scmp.ne.s32.totalorder %s64, %s66
    %p70 = scmp.eq.s32.totalorder %s9, 0
    %p71 = por %p69, %p70
    %p72 = scmp.ne.s32.totalorder %s64, %s66
    %p73 = scmp.eq.s32.totalorder %s14, 1
    %p74 = por %p72, %p73
    %p75 = scmp.ne.s32.totalorder %s66, %s67
    %p76 = scmp.eq.s32.totalorder %s14, 0
    %p77 = por %p75, %p76
    %p78 = scmp.ne.s32.totalorder %s66, %s67
    %p79 = scmp.eq.s32.totalorder %s15, 1
    %p80 = por %p78, %p79
    %p82 = scmp.ne.s32.totalorder %s67, %s81
    %p83 = scmp.eq.s32.totalorder %s15, 0
    %p84 = por %p82, %p83
    %s85 = ssub.s32 %s9, %s16
    %p86 = scmp.eq.s32.totalorder %s85, 0
    %s88 = sadd.s32 %s87, 1
    %s89 = scalar_select %p86, %s87, %s88
    %p92 = pneg %p86
    %p93 = scmp.eq.s32.totalorder %s9, 1
    %p94 = por %p92, %p93
    %p95 = scmp.ne.s32.totalorder %s87, %s90
    %p96 = scmp.eq.s32.totalorder %s9, 0
    %p97 = por %p95, %p96
    %p98 = scmp.ne.s32.totalorder %s87, %s90
    %p99 = scmp.eq.s32.totalorder %s14, 1
    %p100 = por %p98, %p99
    %p101 = scmp.ne.s32.totalorder %s90, %s91
    %p102 = scmp.eq.s32.totalorder %s14, 0
    %p103 = por %p101, %p102
    %p104 = scmp.ne.s32.totalorder %s90, %s91
    %p105 = scmp.eq.s32.totalorder %s15, 1
    %p106 = por %p104, %p105
    %p108 = scmp.ne.s32.totalorder %s91, %s107
    %p109 = scmp.eq.s32.totalorder %s15, 0
    %p110 = por %p108, %p109
    %p111 = scmp.le.s32.totalorder 1, %s9
    %p112 = scmp.lt.s32.totalorder %s9, 3
    %p113 = pnand %p111, %p112
    %p114 = pneg %p113
    // Predicated region
    $region9: #{transformer_forward.9} parent=5 // pred_check
      _
    $region10: #{transformer_forward.9} parent=5 // pred_check_branch
      %116 = sbr.rel (%p113) target = $region12
    $region11: #{transformer_forward.9} parent=5 // pred_region
      %s117 = ssub.s32 %s9, 1
      // Predicated region
      $region13: #{transformer_forward.9} parent=11 // pred_check
        %p118 = pneg %p56
      $region14: #{transformer_forward.9} parent=11 // pred_check_branch
        %120 = sbr.rel (%p118) target = $region16
      $region15: #{transformer_forward.9} parent=11 // pred_region
        _
      $region16: #{transformer_forward.9} parent=11 // pred_fallthru
        _
      // Predicated region
      $region17: #{transformer_forward.9} parent=11 // pred_check
        %p121 = pneg %p77
      $region18: #{transformer_forward.9} parent=11 // pred_check_branch
        %123 = sbr.rel (%p121) target = $region20
      $region19: #{transformer_forward.9} parent=11 // pred_region
        _
      $region20: #{transformer_forward.9} parent=11 // pred_fallthru
        _
    $region12: #{transformer_forward.9} parent=5 // pred_fallthru
      _
    %p124 = scmp.lt.s32.totalorder %s9, 2
    // Predicated region
    $region21: #{transformer_forward.9} parent=5 // pred_check
      %p125 = pneg %p124
    $region22: #{transformer_forward.9} parent=5 // pred_check_branch
      %127 = sbr.rel (%p125) target = $region24
    $region23: #{transformer_forward.9} parent=5 // pred_region
      // Predicated region
      $region25: #{transformer_forward.9} parent=23 // pred_check
        %p128 = pneg %p29
      $region26: #{transformer_forward.9} parent=23 // pred_check_branch
        %130 = sbr.rel (%p128) target = $region28
      $region27: #{transformer_forward.9} parent=23 // pred_region
        %p131 = scmp.lt.s32.totalorder %s9, 1
        %s132 = scalar_select %p131, %s9, 1
        %s133 = smul.addr %s132, 4
        %s134 = scalar_lea.vmem %s0, %s133
      $region28: #{transformer_forward.9} parent=23 // pred_fallthru
        _
    $region24: #{transformer_forward.9} parent=5 // pred_fallthru
      _
    %p135 = scmp.le.s32.totalorder 1, %s9
    %p136 = scmp.lt.s32.totalorder %s9, 3
    %p137 = pnand %p135, %p136
    %p138 = pneg %p137
    // Predicated region
    $region29: #{transformer_forward.9} parent=5 // pred_check
      _
    $region30: #{transformer_forward.9} parent=5 // pred_check_branch
      %140 = sbr.rel (%p137) target = $region32
    $region31: #{transformer_forward.9} parent=5 // pred_region
      %s141 = ssub.s32 %s9, 1
      %p142 = scmp.lt.s32.totalorder %s14, 1
      %s143 = scalar_select %p142, %s14, 1
      %s144 = smul.addr %s143, 4
      %s145 = scalar_lea.vmem %s0, %s144
      %p146 = pneg %p35
      %p147 = pneg %p32
      %p148 = pneg %p56
      %p149 = pneg %p53
      %p150 = pneg %p77
      %p151 = pneg %p74
      %p152 = pneg %p103
      %p153 = pneg %p100
      %p154 = scmp.lt.s32.totalorder %s14, 1
      %s155 = scalar_select %p154, %s14, 1
      %s156 = smul.addr %s155, 4
      %s157 = scalar_lea.vmem %s3, %s156
      %p158 = scmp.lt.s32.totalorder %s14, 1
      %s159 = scalar_select %p158, %s14, 1
      %s160 = smul.addr %s159, 4
      %s161 = scalar_lea.vmem %s0, %s160
      %p162 = scmp.lt.s32.totalorder %s14, 1
      %s163 = scalar_select %p162, %s14, 1
      %s164 = smul.addr %s163, 4
      %s165 = scalar_lea.vmem %s3, %s164
      %v167 = vld [vmem:[%s161] sm:$0xf]
      %v168 = vld [vmem:[%s1] sm:$0xf]
      %v169 = vld [vmem:[%s1 + $0x4] sm:$0xf]
      %v170 = vld [vmem:[%s1 + $0x8] sm:$0xf]
      %v171 = vld [vmem:[%s1 + $0xc] sm:$0xf]
      %v172 = vld [vmem:[%s1 + $0x10] sm:$0xf]
      %v173 = vld [vmem:[%s1 + $0x14] sm:$0xf]
      %v174 = vld [vmem:[%s1 + $0x18] sm:$0xf]
      %v175 = vld [vmem:[%s1 + $0x1c] sm:$0xf]
      %v176 = vld [vmem:[%s1 + $0x20] sm:$0xf]
      %v177 = vld [vmem:[%s1 + $0x24] sm:$0xf]
      %v178 = vld [vmem:[%s1 + $0x28] sm:$0xf]
      %v179 = vld [vmem:[%s1 + $0x2c] sm:$0xf]
      %v180 = vld [vmem:[%s2] sm:$0x1]
      %v182 = vlaneseq
      %v183 = vshrl.u32 %v182, 7
      %v184 = vsub.s32 0, %v183
      %v185 = vrot.slane %v180, %v184
      %v199 = vunpack.c.l.b16 %v168
      %v200 = vunpack.c.l.b16 %v169
      %v201 = vunpack.c.l.b16 %v170
      %v202 = vunpack.c.l.b16 %v171
      %v203 = vunpack.c.l.b16 %v172
      %v204 = vunpack.c.l.b16 %v173
      %v205 = vunpack.c.l.b16 %v174
      %v206 = vunpack.c.l.b16 %v175
      %v207 = vunpack.c.l.b16 %v176
      %v208 = vunpack.c.l.b16 %v177
      %v209 = vunpack.c.l.b16 %v178
      %v210 = vunpack.c.l.b16 %v179
      %v211 = vpack.c.b16 %v200, %v199
      %v212 = vpack.c.b16 %v202, %v201
      %v213 = vpack.c.b16 %v204, %v203
      %v214 = vpack.c.b16 %v206, %v205
      %v215 = vpack.c.b16 %v208, %v207
      %v216 = vpack.c.b16 %v210, %v209
      %vm217 = vcmask 261120
      %v219 = vsel %vm217, %v167, 0
      %v222 = vsel %vm217, %v211, 0
      %v225 = vsel %vm217, %v212, 0
      %v228 = vsel %vm217, %v213, 0
      %v231 = vsel %vm217, %v214, 0
      %v234 = vsel %vm217, %v215, 0
      %v237 = vsel %vm217, %v216, 0
      %239 = vmatprep.subr.bf16.mxu0 0
      %240 = vmatpush1.bf16.xpose.msra.mxu0 0
      %241 = vmatprep.subr.bf16.mxu0 0
      %242 = vmatpush1.bf16.xpose.msra.mxu0 0
      %243 = vmatprep.subr.bf16.mxu0 0
      %244 = vmatpush1.bf16.xpose.msra.mxu0 %v237
      %245 = vmatprep.subr.bf16.mxu0 0
      %246 = vmatpush1.bf16.xpose.msra.mxu0 %v234
      %247 = vmatprep.subr.bf16.mxu0 0
      %248 = vmatpush1.bf16.xpose.msra.mxu0 %v231
      %249 = vmatprep.subr.bf16.mxu0 0
      %250 = vmatpush1.bf16.xpose.msra.mxu0 %v228
      %251 = vmatprep.subr.bf16.mxu0 0
      %252 = vmatpush1.bf16.xpose.msra.mxu0 %v225
      %253 = vmatprep.subr.bf16.mxu0 0
      %254 = vmatpush1.bf16.xpose.msra.mxu0 %v222
      %255 = vmatprep.subr.bf16.mxu0 0
      %256 = vmatpush2.bf16.xpose.msra.mxu0 0
      %257 = vmatprep.subr.bf16.mxu0 0
      %258 = vmatpush2.bf16.xpose.msra.mxu0 0
      %259 = vmatprep.subr.bf16.mxu0 0
      %260 = vmatpush2.bf16.xpose.msra.mxu0 0
      %261 = vmatprep.subr.bf16.mxu0 0
      %262 = vmatpush2.bf16.xpose.msra.mxu0 0
      %263 = vmatprep.subr.bf16.mxu0 0
      %264 = vmatpush2.bf16.xpose.msra.mxu0 0
      %265 = vmatprep.subr.bf16.mxu0 0
      %266 = vmatpush2.bf16.xpose.msra.mxu0 0
      %267 = vmatprep.subr.bf16.mxu0 0
      %268 = vmatpush2.bf16.xpose.msra.mxu0 0
      %269 = vmatprep.subr.bf16.mxu0 0
      %270 = vmatpush2.bf16.xpose.msra.mxu0 0
      %271 = vmatprep.mubr.bf16.mxu0 0
      %272 = vmatmul.mubr.bf16.gmra.mxu0 %v219
      %v273 = vpop.f32.mrf.mxu0
      %v274 = vadd.f32 %v185, %v273
      %v275 = vpop.f32.mrf.mxu0
      %v276 = vpop.f32.mrf.mxu0
      %v277 = vpop.f32.mrf.mxu0
      %278 = vdwg.mxu0
      %v279 = vpack.c.bf16 %v274, %v274
      %vm280 = vcmask 781312
      %281 = vst.msk [vmem:[%s165] sm:$0xf] %vm280, %v279
      %p282 = scmp.lt.s32.totalorder %s14, 1
      %s283 = scalar_select %p282, %s14, 1
      %s284 = smul.addr %s283, 4
      %s285 = scalar_lea.vmem %s3, %s284
      // Predicated region
      $region33: #{transformer_forward.9} parent=31 // pred_check
        %p286 = pneg %p100
      $region34: #{transformer_forward.9} parent=31 // pred_check_branch
        %288 = sbr.rel (%p286) target = $region36
      $region35: #{transformer_forward.9} parent=31 // pred_region
        _
      $region36: #{transformer_forward.9} parent=31 // pred_fallthru
        _
    $region32: #{transformer_forward.9} parent=5 // pred_fallthru
      _
    %p289 = scmp.le.s32.totalorder 2, %s9
    // Predicated region
    $region37: #{transformer_forward.9} parent=5 // pred_check
      %p290 = pneg %p289
    $region38: #{transformer_forward.9} parent=5 // pred_check_branch
      %292 = sbr.rel (%p290) target = $region40
    $region39: #{transformer_forward.9} parent=5 // pred_region
      %s293 = ssub.s32 %s9, 2
      // Predicated region
      $region41: #{transformer_forward.9} parent=39 // pred_check
        %p294 = pneg %p106
      $region42: #{transformer_forward.9} parent=39 // pred_check_branch
        %296 = sbr.rel (%p294) target = $region44
      $region43: #{transformer_forward.9} parent=39 // pred_region
        %p297 = scmp.lt.s32.totalorder %s15, 1
        %s298 = scalar_select %p297, %s15, 1
        %s299 = smul.addr %s298, 4
        %s300 = scalar_lea.vmem %s3, %s299
      $region44: #{transformer_forward.9} parent=39 // pred_fallthru
        _
    $region40: #{transformer_forward.9} parent=5 // pred_fallthru
      _
  $region6: #{transformer_forward.9} parent=0 // loop_footer
    %s13 = sadd.s32 1, %s9
  $region7: #{transformer_forward.9} parent=0 // loop_footer_branch
    %8 = sbr.rel target = $region3
  $region8: #{transformer_forward.9} parent=0 // loop_exit
    _

// kernel: transformer_forward.10
$region0: #{transformer_forward.10}
  #allocation0 [shape = 'u32[]', space=smem, size = 0x4, offset = 0x4, fixed_abs, tag = 'smem constant byte address 0x4 - core index']
  #allocation1 [shape = 'u32[144,128]{1,0:T(1,128)}', space=vmem, size = 0x12000, scoped, tag = 'internal scratch']
  %s0 = inlined_call_operand.vmem [shape: bf16[2,12,8,8], index: 0, kind: input, shape index: {}, may-alias: {0,1,2}]
  %s1 = inlined_call_operand.vmem [shape: bf16[2,12,8,8], index: 1, kind: input, shape index: {}, may-alias: {0,1,2}]
  %s2 = inlined_call_operand.vmem [shape: bf16[2,12,8,8], index: 2, kind: input, shape index: {}, may-alias: {0,1,2}]
  %s3 = inlined_call_operand.vmem [shape: bf16[2,4,8,8], index: 3, kind: output, shape index: {}]
  %s4 = sld [smem:[#allocation0]]
  $region45: #{transformer_forward.10} parent=0
    _
  %s6 = ssub.s32 1, %s4
  %s7 = scalar_select 0, %s6, %s4
  loop: start=0, step=1, limit=10
  $region2: #{transformer_forward.10} parent=0 // loop_pre_header
    _
  $region3: #{transformer_forward.10} parent=0 // loop_header
    %s9 = sphi 0, %s13
    %p10 = scmp.ge.s32.totalorder %s9, 10
    %s16 = sphi 0, %s35
    %s17 = sphi 0, %s31
    %s18 = sphi 0, %s27
    %s19 = sphi 0, %s16
    %s20 = sphi 0, %s17
    %s21 = sphi 0, %s18
    %s22 = sphi 0, %s19
    %s23 = sphi 0, %s20
    %s24 = sphi 0, %s21
    %s42 = sphi 0, %s44
    %s45 = sphi 0, %s42
    %s46 = sphi 0, %s45
    %s62 = sphi 0, %s46
    %s72 = sphi 0, %s74
    %s75 = sphi 0, %s72
    %s76 = sphi 0, %s75
    %s92 = sphi 0, %s76
    %s102 = sphi 0, %s104
    %s105 = sphi 0, %s102
    %s106 = sphi 0, %s105
    %s122 = sphi 0, %s106
    %s132 = sphi 0, %s134
    %s135 = sphi 0, %s132
    %s136 = sphi 0, %s135
    %s152 = sphi 0, %s136
  $region4: #{transformer_forward.10} parent=0 // loop_header_branch
    %12 = sbr.rel (%p10) target = $region8
  $region5: #{transformer_forward.10} parent=0 // loop_body
    %s14 = ssub.s32 %s9, 1
    %s15 = ssub.s32 %s9, 2
    %s25 = sadd.s32 1, %s18
    %p26 = scmp.ge.s32.totalorder %s25, 1
    %s27 = scalar_select %p26, 0, %s25
    %s28 = sadd.s32 1, %s17
    %s29 = scalar_select %p26, %s28, %s17
    %p30 = scmp.ge.s32.totalorder %s29, 4
    %s31 = scalar_select %p30, 0, %s29
    %s32 = sadd.s32 1, %s16
    %s33 = scalar_select %p30, %s32, %s16
    %p34 = scmp.ge.s32.totalorder %s33, 2
    %s35 = scalar_select %p34, 0, %s33
    %s36 = ssub.s32 %s16, %s35
    %s37 = ssub.s32 %s17, %s31
    %s38 = sor.u32 %s36, %s37
    %s39 = ssub.s32 %s18, %s27
    %s40 = sor.u32 %s38, %s39
    %p41 = scmp.eq.s32.totalorder %s40, 0
    %s43 = sadd.s32 %s42, 1
    %s44 = scalar_select %p41, %s42, %s43
    %p47 = pneg %p41
    %p48 = scmp.eq.s32.totalorder %s9, 7
    %p49 = por %p47, %p48
    %p50 = scmp.ne.s32.totalorder %s42, %s45
    %p51 = scmp.eq.s32.totalorder %s9, 0
    %p52 = por %p50, %p51
    %p53 = scmp.ne.s32.totalorder %s42, %s45
    %p54 = scmp.eq.s32.totalorder %s14, 7
    %p55 = por %p53, %p54
    %p56 = scmp.ne.s32.totalorder %s45, %s46
    %p57 = scmp.eq.s32.totalorder %s14, 0
    %p58 = por %p56, %p57
    %p59 = scmp.ne.s32.totalorder %s45, %s46
    %p60 = scmp.eq.s32.totalorder %s15, 7
    %p61 = por %p59, %p60
    %p63 = scmp.ne.s32.totalorder %s46, %s62
    %p64 = scmp.eq.s32.totalorder %s15, 0
    %p65 = por %p63, %p64
    %s66 = sadd.s32 %s17, 4
    %s67 = sadd.s32 %s31, 4
    %s68 = ssub.s32 %s16, %s35
    %s69 = ssub.s32 %s66, %s67
    %s70 = sor.u32 %s68, %s69
    %p71 = scmp.eq.s32.totalorder %s70, 0
    %s73 = sadd.s32 %s72, 1
    %s74 = scalar_select %p71, %s72, %s73
    %p77 = pneg %p71
    %p78 = scmp.eq.s32.totalorder %s9, 7
    %p79 = por %p77, %p78
    %p80 = scmp.ne.s32.totalorder %s72, %s75
    %p81 = scmp.eq.s32.totalorder %s9, 0
    %p82 = por %p80, %p81
    %p83 = scmp.ne.s32.totalorder %s72, %s75
    %p84 = scmp.eq.s32.totalorder %s14, 7
    %p85 = por %p83, %p84
    %p86 = scmp.ne.s32.totalorder %s75, %s76
    %p87 = scmp.eq.s32.totalorder %s14, 0
    %p88 = por %p86, %p87
    %p89 = scmp.ne.s32.totalorder %s75, %s76
    %p90 = scmp.eq.s32.totalorder %s15, 7
    %p91 = por %p89, %p90
    %p93 = scmp.ne.s32.totalorder %s76, %s92
    %p94 = scmp.eq.s32.totalorder %s15, 0
    %p95 = por %p93, %p94
    %s96 = sadd.s32 %s17, 8
    %s97 = sadd.s32 %s31, 8
    %s98 = ssub.s32 %s16, %s35
    %s99 = ssub.s32 %s96, %s97
    %s100 = sor.u32 %s98, %s99
    %p101 = scmp.eq.s32.totalorder %s100, 0
    %s103 = sadd.s32 %s102, 1
    %s104 = scalar_select %p101, %s102, %s103
    %p107 = pneg %p101
    %p108 = scmp.eq.s32.totalorder %s9, 7
    %p109 = por %p107, %p108
    %p110 = scmp.ne.s32.totalorder %s102, %s105
    %p111 = scmp.eq.s32.totalorder %s9, 0
    %p112 = por %p110, %p111
    %p113 = scmp.ne.s32.totalorder %s102, %s105
    %p114 = scmp.eq.s32.totalorder %s14, 7
    %p115 = por %p113, %p114
    %p116 = scmp.ne.s32.totalorder %s105, %s106
    %p117 = scmp.eq.s32.totalorder %s14, 0
    %p118 = por %p116, %p117
    %p119 = scmp.ne.s32.totalorder %s105, %s106
    %p120 = scmp.eq.s32.totalorder %s15, 7
    %p121 = por %p119, %p120
    %p123 = scmp.ne.s32.totalorder %s106, %s122
    %p124 = scmp.eq.s32.totalorder %s15, 0
    %p125 = por %p123, %p124
    %s126 = ssub.s32 %s16, %s35
    %s127 = ssub.s32 %s17, %s31
    %s128 = sor.u32 %s126, %s127
    %s129 = ssub.s32 %s18, %s27
    %s130 = sor.u32 %s128, %s129
    %p131 = scmp.eq.s32.totalorder %s130, 0
    %s133 = sadd.s32 %s132, 1
    %s134 = scalar_select %p131, %s132, %s133
    %p137 = pneg %p131
    %p138 = scmp.eq.s32.totalorder %s9, 7
    %p139 = por %p137, %p138
    %p140 = scmp.ne.s32.totalorder %s132, %s135
    %p141 = scmp.eq.s32.totalorder %s9, 0
    %p142 = por %p140, %p141
    %p143 = scmp.ne.s32.totalorder %s132, %s135
    %p144 = scmp.eq.s32.totalorder %s14, 7
    %p145 = por %p143, %p144
    %p146 = scmp.ne.s32.totalorder %s135, %s136
    %p147 = scmp.eq.s32.totalorder %s14, 0
    %p148 = por %p146, %p147
    %p149 = scmp.ne.s32.totalorder %s135, %s136
    %p150 = scmp.eq.s32.totalorder %s15, 7
    %p151 = por %p149, %p150
    %p153 = scmp.ne.s32.totalorder %s136, %s152
    %p154 = scmp.eq.s32.totalorder %s15, 0
    %p155 = por %p153, %p154
    %p156 = scmp.le.s32.totalorder 1, %s9
    %p157 = scmp.lt.s32.totalorder %s9, 9
    %p158 = pnand %p156, %p157
    %p159 = pneg %p158
    // Predicated region
    $region9: #{transformer_forward.10} parent=5 // pred_check
      _
    $region10: #{transformer_forward.10} parent=5 // pred_check_branch
      %161 = sbr.rel (%p158) target = $region12
    $region11: #{transformer_forward.10} parent=5 // pred_region
      %s162 = ssub.s32 %s9, 1
    $region12: #{transformer_forward.10} parent=5 // pred_fallthru
      _
    %p163 = scmp.lt.s32.totalorder %s9, 8
    // Predicated region
    $region13: #{transformer_forward.10} parent=5 // pred_check
      %p164 = pneg %p163
    $region14: #{transformer_forward.10} parent=5 // pred_check_branch
      %166 = sbr.rel (%p164) target = $region16
    $region15: #{transformer_forward.10} parent=5 // pred_region
      // Predicated region
      $region17: #{transformer_forward.10} parent=15 // pred_check
        %p167 = pneg %p52
      $region18: #{transformer_forward.10} parent=15 // pred_check_branch
        %169 = sbr.rel (%p167) target = $region20
      $region19: #{transformer_forward.10} parent=15 // pred_region
        %p170 = scmp.lt.s32.totalorder %s16, 1
        %s171 = scalar_select %p170, %s16, 1
        %p172 = scmp.lt.s32.totalorder %s17, 11
        %s173 = scalar_select %p172, %s17, 11
        %p174 = scmp.lt.s32.totalorder %s18, 0
        %s175 = scalar_select %p174, %s18, 0
        %s176 = sadd.s32 %s175, %s173
        %s177 = smul.addr %s171, 12
        %s178 = sadd.s32 %s176, %s177
        %s179 = smul.addr %s178, 4
        %s180 = scalar_lea.vmem %s0, %s179
      $region20: #{transformer_forward.10} parent=15 // pred_fallthru
        _
      // Predicated region
      $region21: #{transformer_forward.10} parent=15 // pred_check
        %p181 = pneg %p82
      $region22: #{transformer_forward.10} parent=15 // pred_check_branch
        %183 = sbr.rel (%p181) target = $region24
      $region23: #{transformer_forward.10} parent=15 // pred_region
        %s184 = sadd.s32 %s17, 4
        %p185 = scmp.lt.s32.totalorder %s16, 1
        %s186 = scalar_select %p185, %s16, 1
        %p187 = scmp.lt.s32.totalorder %s184, 11
        %s188 = scalar_select %p187, %s184, 11
        %s189 = smul.addr %s186, 12
        %s190 = sadd.s32 %s188, %s189
        %s191 = smul.addr %s190, 4
        %s192 = scalar_lea.vmem %s1, %s191
        %s193 = sadd.s32 %s17, 4
      $region24: #{transformer_forward.10} parent=15 // pred_fallthru
        _
      // Predicated region
      $region25: #{transformer_forward.10} parent=15 // pred_check
        %p194 = pneg %p112
      $region26: #{transformer_forward.10} parent=15 // pred_check_branch
        %196 = sbr.rel (%p194) target = $region28
      $region27: #{transformer_forward.10} parent=15 // pred_region
        %s197 = sadd.s32 %s17, 8
        %p198 = scmp.lt.s32.totalorder %s16, 1
        %s199 = scalar_select %p198, %s16, 1
        %p200 = scmp.lt.s32.totalorder %s197, 11
        %s201 = scalar_select %p200, %s197, 11
        %s202 = smul.addr %s199, 12
        %s203 = sadd.s32 %s201, %s202
        %s204 = smul.addr %s203, 4
        %s205 = scalar_lea.vmem %s2, %s204
        %s206 = sadd.s32 %s17, 8
      $region28: #{transformer_forward.10} parent=15 // pred_fallthru
        _
    $region16: #{transformer_forward.10} parent=5 // pred_fallthru
      _
    %p207 = scmp.le.s32.totalorder 1, %s9
    %p208 = scmp.lt.s32.totalorder %s9, 9
    %p209 = pnand %p207, %p208
    %p210 = pneg %p209
    // Predicated region
    $region29: #{transformer_forward.10} parent=5 // pred_check
      _
    $region30: #{transformer_forward.10} parent=5 // pred_check_branch
      %212 = sbr.rel (%p209) target = $region32
    $region31: #{transformer_forward.10} parent=5 // pred_region
      %s213 = ssub.s32 %s9, 1
      %p214 = scmp.lt.s32.totalorder %s19, 1
      %s215 = scalar_select %p214, %s19, 1
      %p216 = scmp.lt.s32.totalorder %s20, 11
      %s217 = scalar_select %p216, %s20, 11
      %p218 = scmp.lt.s32.totalorder %s21, 0
      %s219 = scalar_select %p218, %s21, 0
      %s220 = sadd.s32 %s219, %s217
      %s221 = smul.addr %s215, 12
      %s222 = sadd.s32 %s220, %s221
      %s223 = smul.addr %s222, 4
      %s224 = scalar_lea.vmem %s0, %s223
      %p225 = pneg %p58
      %p226 = pneg %p55
      %s227 = sadd.s32 %s20, 4
      %p228 = scmp.lt.s32.totalorder %s19, 1
      %s229 = scalar_select %p228, %s19, 1
      %p230 = scmp.lt.s32.totalorder %s227, 11
      %s231 = scalar_select %p230, %s227, 11
      %s232 = smul.addr %s229, 12
      %s233 = sadd.s32 %s231, %s232
      %s234 = smul.addr %s233, 4
      %s235 = scalar_lea.vmem %s1, %s234
      %p236 = pneg %p88
      %p237 = pneg %p85
      %s238 = sadd.s32 %s20, 8
      %p239 = scmp.lt.s32.totalorder %s19, 1
      %s240 = scalar_select %p239, %s19, 1
      %p241 = scmp.lt.s32.totalorder %s238, 11
      %s242 = scalar_select %p241, %s238, 11
      %s243 = smul.addr %s240, 12
      %s244 = sadd.s32 %s242, %s243
      %s245 = smul.addr %s244, 4
      %s246 = scalar_lea.vmem %s2, %s245
      %p247 = pneg %p118
      %p248 = pneg %p115
      %p249 = pneg %p148
      %p250 = pneg %p145
      %p251 = scmp.lt.s32.totalorder %s19, 1
      %s252 = scalar_select %p251, %s19, 1
      %p253 = scmp.lt.s32.totalorder %s20, 3
      %s254 = scalar_select %p253, %s20, 3
      %p255 = scmp.lt.s32.totalorder %s21, 0
      %s256 = scalar_select %p255, %s21, 0
      %s257 = sadd.s32 %s256, %s254
      %s258 = smul.addr %s252, 4
      %s259 = sadd.s32 %s257, %s258
      %s260 = smul.addr %s259, 4
      %s261 = scalar_lea.vmem %s3, %s260
      %p262 = scmp.lt.s32.totalorder %s19, 1
      %s263 = scalar_select %p262, %s19, 1
      %p264 = scmp.lt.s32.totalorder %s20, 11
      %s265 = scalar_select %p264, %s20, 11
      %p266 = scmp.lt.s32.totalorder %s21, 0
      %s267 = scalar_select %p266, %s21, 0
      %s268 = sadd.s32 %s267, %s265
      %s269 = smul.addr %s263, 12
      %s270 = sadd.s32 %s268, %s269
      %s271 = smul.addr %s270, 4
      %s272 = scalar_lea.vmem %s0, %s271
      %s273 = sadd.s32 %s20, 4
      %p274 = scmp.lt.s32.totalorder %s19, 1
      %s275 = scalar_select %p274, %s19, 1
      %p276 = scmp.lt.s32.totalorder %s273, 11
      %s277 = scalar_select %p276, %s273, 11
      %s278 = smul.addr %s275, 12
      %s279 = sadd.s32 %s277, %s278
      %s280 = smul.addr %s279, 4
      %s281 = scalar_lea.vmem %s1, %s280
      %s282 = sadd.s32 %s20, 4
      %s283 = sadd.s32 %s20, 8
      %p284 = scmp.lt.s32.totalorder %s19, 1
      %s285 = scalar_select %p284, %s19, 1
      %p286 = scmp.lt.s32.totalorder %s283, 11
      %s287 = scalar_select %p286, %s283, 11
      %s288 = smul.addr %s285, 12
      %s289 = sadd.s32 %s287, %s288
      %s290 = smul.addr %s289, 4
      %s291 = scalar_lea.vmem %s2, %s290
      %s292 = sadd.s32 %s20, 8
      %p293 = scmp.lt.s32.totalorder %s19, 1
      %s294 = scalar_select %p293, %s19, 1
      %p295 = scmp.lt.s32.totalorder %s20, 3
      %s296 = scalar_select %p295, %s20, 3
      %p297 = scmp.lt.s32.totalorder %s21, 0
      %s298 = scalar_select %p297, %s21, 0
      %s299 = sadd.s32 %s298, %s296
      %s300 = smul.addr %s294, 4
      %s301 = sadd.s32 %s299, %s300
      %s302 = smul.addr %s301, 4
      %s303 = scalar_lea.vmem %s3, %s302
      %v305 = vld [vmem:[%s272] sm:$0xf]
      %v306 = vld [vmem:[%s281] sm:$0xf]
      %v307 = vld [vmem:[%s291] sm:$0xf]
      %vm308 = vcmask 64512
      %v310 = vsel %vm308, %v305, 0
      %v313 = vsel %vm308, %v306, 0
      %315 = vmatprep.subr.bf16.mxu0 0
      %316 = vmatpush1.bf16.xpose.msra.mxu0 0
      %317 = vmatprep.subr.bf16.mxu0 0
      %318 = vmatpush1.bf16.xpose.msra.mxu0 0
      %319 = vmatprep.subr.bf16.mxu0 0
      %320 = vmatpush1.bf16.xpose.msra.mxu0 0
      %321 = vmatprep.subr.bf16.mxu0 0
      %322 = vmatpush1.bf16.xpose.msra.mxu0 0
      %323 = vmatprep.subr.bf16.mxu0 0
      %324 = vmatpush1.bf16.xpose.msra.mxu0 0
      %325 = vmatprep.subr.bf16.mxu0 0
      %326 = vmatpush1.bf16.xpose.msra.mxu0 0
      %327 = vmatprep.subr.bf16.mxu0 0
      %328 = vmatpush1.bf16.xpose.msra.mxu0 0
      %329 = vmatprep.subr.bf16.mxu0 0
      %330 = vmatpush1.bf16.xpose.msra.mxu0 %v313
      %331 = vmatprep.subr.bf16.mxu0 0
      %332 = vmatpush2.bf16.xpose.msra.mxu0 0
      %333 = vmatprep.subr.bf16.mxu0 0
      %334 = vmatpush2.bf16.xpose.msra.mxu0 0
      %335 = vmatprep.subr.bf16.mxu0 0
      %336 = vmatpush2.bf16.xpose.msra.mxu0 0
      %337 = vmatprep.subr.bf16.mxu0 0
      %338 = vmatpush2.bf16.xpose.msra.mxu0 0
      %339 = vmatprep.subr.bf16.mxu0 0
      %340 = vmatpush2.bf16.xpose.msra.mxu0 0
      %341 = vmatprep.subr.bf16.mxu0 0
      %342 = vmatpush2.bf16.xpose.msra.mxu0 0
      %343 = vmatprep.subr.bf16.mxu0 0
      %344 = vmatpush2.bf16.xpose.msra.mxu0 0
      %345 = vmatprep.subr.bf16.mxu0 0
      %346 = vmatpush2.bf16.xpose.msra.mxu0 0
      %347 = vmatprep.mubr.bf16.mxu0 0
      %348 = vmatmul.mubr.bf16.gmra.mxu0 %v310
      %v349 = vpop.f32.mrf.mxu0
      %v350 = vadd.f32 0.0, %v349
      %v351 = vpop.f32.mrf.mxu0
      %v352 = vpop.f32.mrf.mxu0
      %v353 = vpop.f32.mrf.mxu0
      %354 = vdwg.mxu0
      %v355 = vlaneseq
      %v356 = vshrl.u32 %v355, 7
      %s357 = smul.u32 %s21, 8
      %v358 = vstv %s357
      %v359 = vadd.s32 %v356, %v358
      %v360 = vlaneseq
      %v361 = vand.u32 %v360, 127
      %vm362 = vcmp.gt.s32.totalorder %v361, %v359
      %v363 = vsel %vm362, -1e+30, %v350
      %v364 = vsel %vm308, %v363, -inf
      %365 = vmax.xlane.f32.xlu0 %v364
      %v366 = vpop.xlane.xlu0 %365
      %v367 = vsub.f32 %v363, %v366
      %v368 = vmul.f32 %v367, 1.442695
      %v369 = vpow.pop %v368
      %v370 = vsel %vm308, %v369, 0.0
      %371 = vadd.xlane.f32.xlu0 %v370
      %v372 = vpop.xlane.xlu0 %371
      %v373 = vrcp.pop %v372
      %v374 = vmul.f32 %v369, %v373
      %v375 = vpack.c.bf16 %v374, %v374
      %v377 = vsel %vm308, %v375, 0
      %vm379 = vcmask 1043456
      %v381 = vsel %vm379, %v307, 0
      %383 = vmatprep.subr.bf16.mxu0 0
      %384 = vmatpush1.bf16.msra.mxu0 0
      %385 = vmatprep.subr.bf16.mxu0 0
      %386 = vmatpush1.bf16.msra.mxu0 0
      %387 = vmatprep.subr.bf16.mxu0 0
      %388 = vmatpush1.bf16.msra.mxu0 0
      %389 = vmatprep.subr.bf16.mxu0 0
      %390 = vmatpush1.bf16.msra.mxu0 0
      %391 = vmatprep.subr.bf16.mxu0 0
      %392 = vmatpush1.bf16.msra.mxu0 0
      %393 = vmatprep.subr.bf16.mxu0 0
      %394 = vmatpush1.bf16.msra.mxu0 0
      %395 = vmatprep.subr.bf16.mxu0 0
      %396 = vmatpush1.bf16.msra.mxu0 0
      %397 = vmatprep.subr.bf16.mxu0 0
      %398 = vmatpush1.bf16.msra.mxu0 %v381
      %399 = vmatprep.subr.bf16.mxu0 0
      %400 = vmatpush2.bf16.msra.mxu0 0
      %401 = vmatprep.subr.bf16.mxu0 0
      %402 = vmatpush2.bf16.msra.mxu0 0
      %403 = vmatprep.subr.bf16.mxu0 0
      %404 = vmatpush2.bf16.msra.mxu0 0
      %405 = vmatprep.subr.bf16.mxu0 0
      %406 = vmatpush2.bf16.msra.mxu0 0
      %407 = vmatprep.subr.bf16.mxu0 0
      %408 = vmatpush2.bf16.msra.mxu0 0
      %409 = vmatprep.subr.bf16.mxu0 0
      %410 = vmatpush2.bf16.msra.mxu0 0
      %411 = vmatprep.subr.bf16.mxu0 0
      %412 = vmatpush2.bf16.msra.mxu0 0
      %413 = vmatprep.subr.bf16.mxu0 0
      %414 = vmatpush2.bf16.msra.mxu0 0
      %415 = vmatprep.mubr.bf16.mxu0 0
      %416 = vmatmul.mubr.bf16.gmra.mxu0 %v377
      %v417 = vpop.f32.mrf.mxu0
      %v418 = vadd.f32 0.0, %v417
      %v419 = vpop.f32.mrf.mxu0
      %v420 = vpop.f32.mrf.mxu0
      %v421 = vpop.f32.mrf.mxu0
      %422 = vdwg.mxu0
      %v423 = vpack.c.bf16 %v418, %v418
      %vm424 = vcmask 60416
      %425 = vst.msk [vmem:[%s303] sm:$0xf] %vm424, %v423
      %p426 = scmp.lt.s32.totalorder %s19, 1
      %s427 = scalar_select %p426, %s19, 1
      %p428 = scmp.lt.s32.totalorder %s20, 3
      %s429 = scalar_select %p428, %s20, 3
      %p430 = scmp.lt.s32.totalorder %s21, 0
      %s431 = scalar_select %p430, %s21, 0
      %s432 = sadd.s32 %s431, %s429
      %s433 = smul.addr %s427, 4
      %s434 = sadd.s32 %s432, %s433
      %s435 = smul.addr %s434, 4
      %s436 = scalar_lea.vmem %s3, %s435
      // Predicated region
      $region33: #{transformer_forward.10} parent=31 // pred_check
        %p437 = pneg %p145
      $region34: #{transformer_forward.10} parent=31 // pred_check_branch
        %439 = sbr.rel (%p437) target = $region36
      $region35: #{transformer_forward.10} parent=31 // pred_region
        _
      $region36: #{transformer_forward.10} parent=31 // pred_fallthru
        _
    $region32: #{transformer_forward.10} parent=5 // pred_fallthru
      _
    %p440 = scmp.le.s32.totalorder 2, %s9
    // Predicated region
    $region37: #{transformer_forward.10} parent=5 // pred_check
      %p441 = pneg %p440
    $region38: #{transformer_forward.10} parent=5 // pred_check_branch
      %443 = sbr.rel (%p441) target = $region40
    $region39: #{transformer_forward.10} parent=5 // pred_region
      %s444 = ssub.s32 %s9, 2
      // Predicated region
      $region41: #{transformer_forward.10} parent=39 // pred_check
        %p445 = pneg %p151
      $region42: #{transformer_forward.10} parent=39 // pred_check_branch
        %447 = sbr.rel (%p445) target = $region44
      $region43: #{transformer_forward.10} parent=39 // pred_region
        %p448 = scmp.lt.s32.totalorder %s22, 1
        %s449 = scalar_select %p448, %s22, 1
        %p450 = scmp.lt.s32.totalorder %s23, 3
        %s451 = scalar_select %p450, %s23, 3
        %p452 = scmp.lt.s32.totalorder %s24, 0
        %s453 = scalar_select %p452, %s24, 0
        %s454 = sadd.s32 %s453, %s451
        %s455 = smul.addr %s449, 4
        %s456 = sadd.s32 %s454, %s455
        %s457 = smul.addr %s456, 4
        %s458 = scalar_lea.vmem %s3, %s457
      $region44: #{transformer_forward.10} parent=39 // pred_fallthru
        _
    $region40: #{transformer_forward.10} parent=5 // pred_fallthru
      _
  $region6: #{transformer_forward.10} parent=0 // loop_footer
    %s13 = sadd.s32 1, %s9
  $region7: #{transformer_forward.10} parent=0 // loop_footer_branch
    %8 = sbr.rel target = $region3
  $region8: #{transformer_forward.10} parent=0 // loop_exit
    _

// kernel: transformer_forward.15
$region0: #{transformer_forward.15}
  #allocation0 [shape = 'u32[]', space=smem, size = 0x4, offset = 0x4, fixed_abs, tag = 'smem constant byte address 0x4 - core index']
  #allocation1 [shape = 'u32[144,128]{1,0:T(1,128)}', space=vmem, size = 0x12000, scoped, tag = 'internal scratch']
  %s0 = inlined_call_operand.vmem [shape: bf16[16,32], index: 0, kind: input, shape index: {}]
  %s1 = inlined_call_operand.vmem [shape: f32[1,32], index: 1, kind: input, shape index: {}]
  %s2 = inlined_call_operand.vmem [shape: f32[1,32], index: 2, kind: input, shape index: {}]
  %s3 = inlined_call_operand.vmem [shape: bf16[50,32], index: 3, kind: input, shape index: {}]
  %s4 = inlined_call_operand.vmem [shape: f32[1,50], index: 4, kind: input, shape index: {}]
  %s5 = inlined_call_operand.hbm [shape: f32[16,50], index: 5, kind: output, shape index: {}]
  %s6 = sld [smem:[#allocation0]]
  $region53: #{transformer_forward.15} parent=0
    _
  %s8 = ssub.s32 1, %s6
  %s9 = scalar_select 0, %s8, %s6
  $region1: #{transformer_forward.15} parent=0
    #allocation2 [shape = 'u8[8192]{0}', space=vmem, size = 0x2000, scoped, tag = 'output window, operand 0']
    #allocation3 [shape = 's32[2]{0}', space=sflag, size = 0x8, scoped, tag = 'scoped memory for transformer_forward.15']
    %10 = vsyncpa [#allocation3], 0
    %s11 = scalar_lea.sflag [#allocation3], 1
    %12 = vsyncpa %s11, 0
    loop: start=0, step=1, limit=4
    $region2: #{transformer_forward.15} parent=1 // loop_pre_header
      _
    $region3: #{transformer_forward.15} parent=1 // loop_header
      %s14 = sphi 0, %s18
      %p15 = scmp.ge.s32.totalorder %s14, 4
      %s24 = sphi 0, %s26
      %s27 = sphi 0, %s24
      %s28 = sphi 0, %s27
      %s44 = sphi 0, %s28
      %s48 = sphi 0, %s48
      %s50 = sphi 0, %s48
      %s51 = sphi 0, %s50
      %s65 = sphi 0, %s51
      %s69 = sphi 0, %s69
      %s71 = sphi 0, %s69
      %s72 = sphi 0, %s71
      %s86 = sphi 0, %s72
      %s90 = sphi 0, %s90
      %s92 = sphi 0, %s90
      %s93 = sphi 0, %s92
      %s107 = sphi 0, %s93
      %s111 = sphi 0, %s111
      %s113 = sphi 0, %s111
      %s114 = sphi 0, %s113
      %s128 = sphi 0, %s114
      %s134 = sphi 0, %s136
      %s137 = sphi 0, %s134
      %s138 = sphi 0, %s137
      %s154 = sphi 0, %s138
    $region4: #{transformer_forward.15} parent=1 // loop_header_branch
      %17 = sbr.rel (%p15) target = $region8
    $region5: #{transformer_forward.15} parent=1 // loop_body
      %s19 = ssub.s32 %s14, 1
      %s20 = ssub.s32 %s14, 2
      %s21 = sadd.s32 %s14, 1
      %s22 = ssub.s32 %s14, %s21
      %p23 = scmp.eq.s32.totalorder %s22, 0
      %s25 = sadd.s32 %s24, 1
      %s26 = scalar_select %p23, %s24, %s25
      %p29 = pneg %p23
      %p30 = scmp.eq.s32.totalorder %s14, 1
      %p31 = por %p29, %p30
      %p32 = scmp.ne.s32.totalorder %s24, %s27
      %p33 = scmp.eq.s32.totalorder %s14, 0
      %p34 = por %p32, %p33
      %p35 = scmp.ne.s32.totalorder %s24, %s27
      %p36 = scmp.eq.s32.totalorder %s19, 1
      %p37 = por %p35, %p36
      %p38 = scmp.ne.s32.totalorder %s27, %s28
      %p39 = scmp.eq.s32.totalorder %s19, 0
      %p40 = por %p38, %p39
      %p41 = scmp.ne.s32.totalorder %s27, %s28
      %p42 = scmp.eq.s32.totalorder %s20, 1
      %p43 = por %p41, %p42
      %p45 = scmp.ne.s32.totalorder %s28, %s44
      %p46 = scmp.eq.s32.totalorder %s20, 0
      %p47 = por %p45, %p46
      %s49 = sadd.s32 %s48, 1
      %p52 = scmp.eq.s32.totalorder %s14, 1
      %p53 = scmp.ne.s32.totalorder %s48, %s50
      %p54 = scmp.eq.s32.totalorder %s14, 0
      %p55 = por %p53, %p54
      %p56 = scmp.ne.s32.totalorder %s48, %s50
      %p57 = scmp.eq.s32.totalorder %s19, 1
      %p58 = por %p56, %p57
      %p59 = scmp.ne.s32.totalorder %s50, %s51
      %p60 = scmp.eq.s32.totalorder %s19, 0
      %p61 = por %p59, %p60
      %p62 = scmp.ne.s32.totalorder %s50, %s51
      %p63 = scmp.eq.s32.totalorder %s20, 1
      %p64 = por %p62, %p63
      %p66 = scmp.ne.s32.totalorder %s51, %s65
      %p67 = scmp.eq.s32.totalorder %s20, 0
      %p68 = por %p66, %p67
      %s70 = sadd.s32 %s69, 1
      %p73 = scmp.eq.s32.totalorder %s14, 1
      %p74 = scmp.ne.s32.totalorder %s69, %s71
      %p75 = scmp.eq.s32.totalorder %s14, 0
      %p76 = por %p74, %p75
      %p77 = scmp.ne.s32.totalorder %s69, %s71
      %p78 = scmp.eq.s32.totalorder %s19, 1
      %p79 = por %p77, %p78
      %p80 = scmp.ne.s32.totalorder %s71, %s72
      %p81 = scmp.eq.s32.totalorder %s19, 0
      %p82 = por %p80, %p81
      %p83 = scmp.ne.s32.totalorder %s71, %s72
      %p84 = scmp.eq.s32.totalorder %s20, 1
      %p85 = por %p83, %p84
      %p87 = scmp.ne.s32.totalorder %s72, %s86
      %p88 = scmp.eq.s32.totalorder %s20, 0
      %p89 = por %p87, %p88
      %s91 = sadd.s32 %s90, 1
      %p94 = scmp.eq.s32.totalorder %s14, 1
      %p95 = scmp.ne.s32.totalorder %s90, %s92
      %p96 = scmp.eq.s32.totalorder %s14, 0
      %p97 = por %p95, %p96
      %p98 = scmp.ne.s32.totalorder %s90, %s92
      %p99 = scmp.eq.s32.totalorder %s19, 1
      %p100 = por %p98, %p99
      %p101 = scmp.ne.s32.totalorder %s92, %s93
      %p102 = scmp.eq.s32.totalorder %s19, 0
      %p103 = por %p101, %p102
      %p104 = scmp.ne.s32.totalorder %s92, %s93
      %p105 = scmp.eq.s32.totalorder %s20, 1
      %p106 = por %p104, %p105
      %p108 = scmp.ne.s32.totalorder %s93, %s107
      %p109 = scmp.eq.s32.totalorder %s20, 0
      %p110 = por %p108, %p109
      %s112 = sadd.s32 %s111, 1
      %p115 = scmp.eq.s32.totalorder %s14, 1
      %p116 = scmp.ne.s32.totalorder %s111, %s113
      %p117 = scmp.eq.s32.totalorder %s14, 0
      %p118 = por %p116, %p117
      %p119 = scmp.ne.s32.totalorder %s111, %s113
      %p120 = scmp.eq.s32.totalorder %s19, 1
      %p121 = por %p119, %p120
      %p122 = scmp.ne.s32.totalorder %s113, %s114
      %p123 = scmp.eq.s32.totalorder %s19, 0
      %p124 = por %p122, %p123
      %p125 = scmp.ne.s32.totalorder %s113, %s114
      %p126 = scmp.eq.s32.totalorder %s20, 1
      %p127 = por %p125, %p126
      %p129 = scmp.ne.s32.totalorder %s114, %s128
      %p130 = scmp.eq.s32.totalorder %s20, 0
      %p131 = por %p129, %p130
      %s132 = ssub.s32 %s14, %s21
      %p133 = scmp.eq.s32.totalorder %s132, 0
      %s135 = sadd.s32 %s134, 1
      %s136 = scalar_select %p133, %s134, %s135
      %p139 = pneg %p133
      %p140 = scmp.eq.s32.totalorder %s14, 1
      %p141 = por %p139, %p140
      %p142 = scmp.ne.s32.totalorder %s134, %s137
      %p143 = scmp.eq.s32.totalorder %s14, 0
      %p144 = por %p142, %p143
      %p145 = scmp.ne.s32.totalorder %s134, %s137
      %p146 = scmp.eq.s32.totalorder %s19, 1
      %p147 = por %p145, %p146
      %p148 = scmp.ne.s32.totalorder %s137, %s138
      %p149 = scmp.eq.s32.totalorder %s19, 0
      %p150 = por %p148, %p149
      %p151 = scmp.ne.s32.totalorder %s137, %s138
      %p152 = scmp.eq.s32.totalorder %s20, 1
      %p153 = por %p151, %p152
      %p155 = scmp.ne.s32.totalorder %s138, %s154
      %p156 = scmp.eq.s32.totalorder %s20, 0
      %p157 = por %p155, %p156
      %p158 = scmp.le.s32.totalorder 1, %s14
      %p159 = scmp.lt.s32.totalorder %s14, 3
      %p160 = pnand %p158, %p159
      %p161 = pneg %p160
      // Predicated region
      $region9: #{transformer_forward.15} parent=5 // pred_check
        _
      $region10: #{transformer_forward.15} parent=5 // pred_check_branch
        %163 = sbr.rel (%p160) target = $region12
      $region11: #{transformer_forward.15} parent=5 // pred_region
        %s164 = ssub.s32 %s14, 1
        // Predicated region
        $region13: #{transformer_forward.15} parent=11 // pred_check
          %p165 = pneg %p61
        $region14: #{transformer_forward.15} parent=11 // pred_check_branch
          %167 = sbr.rel (%p165) target = $region16
        $region15: #{transformer_forward.15} parent=11 // pred_region
          _
        $region16: #{transformer_forward.15} parent=11 // pred_fallthru
          _
        // Predicated region
        $region17: #{transformer_forward.15} parent=11 // pred_check
          %p168 = pneg %p82
        $region18: #{transformer_forward.15} parent=11 // pred_check_branch
          %170 = sbr.rel (%p168) target = $region20
        $region19: #{transformer_forward.15} parent=11 // pred_region
          _
        $region20: #{transformer_forward.15} parent=11 // pred_fallthru
          _
        // Predicated region
        $region21: #{transformer_forward.15} parent=11 // pred_check
          %p171 = pneg %p103
        $region22: #{transformer_forward.15} parent=11 // pred_check_branch
          %173 = sbr.rel (%p171) target = $region24
        $region23: #{transformer_forward.15} parent=11 // pred_region
          _
        $region24: #{transformer_forward.15} parent=11 // pred_fallthru
          _
        // Predicated region
        $region25: #{transformer_forward.15} parent=11 // pred_check
          %p174 = pneg %p124
        $region26: #{transformer_forward.15} parent=11 // pred_check_branch
          %176 = sbr.rel (%p174) target = $region28
        $region27: #{transformer_forward.15} parent=11 // pred_region
          _
        $region28: #{transformer_forward.15} parent=11 // pred_fallthru
          _
      $region12: #{transformer_forward.15} parent=5 // pred_fallthru
        _
      %p177 = scmp.lt.s32.totalorder %s14, 2
      // Predicated region
      $region29: #{transformer_forward.15} parent=5 // pred_check
        %p178 = pneg %p177
      $region30: #{transformer_forward.15} parent=5 // pred_check_branch
        %180 = sbr.rel (%p178) target = $region32
      $region31: #{transformer_forward.15} parent=5 // pred_region
        // Predicated region
        $region33: #{transformer_forward.15} parent=31 // pred_check
          %p181 = pneg %p34
        $region34: #{transformer_forward.15} parent=31 // pred_check_branch
          %183 = sbr.rel (%p181) target = $region36
        $region35: #{transformer_forward.15} parent=31 // pred_region
          %p184 = scmp.lt.s32.totalorder %s14, 1
          %s185 = scalar_select %p184, %s14, 1
          %s186 = smul.addr %s185, 4
          %s187 = scalar_lea.vmem %s0, %s186
        $region36: #{transformer_forward.15} parent=31 // pred_fallthru
          _
      $region32: #{transformer_forward.15} parent=5 // pred_fallthru
        _
      %p188 = scmp.le.s32.totalorder 1, %s14
      %p189 = scmp.lt.s32.totalorder %s14, 3
      %p190 = pnand %p188, %p189
      %p191 = pneg %p190
      // Predicated region
      $region37: #{transformer_forward.15} parent=5 // pred_check
        _
      $region38: #{transformer_forward.15} parent=5 // pred_check_branch
        %193 = sbr.rel (%p190) target = $region40
      $region39: #{transformer_forward.15} parent=5 // pred_region
        %s194 = ssub.s32 %s14, 1
        %p195 = scmp.lt.s32.totalorder %s19, 1
        %s196 = scalar_select %p195, %s19, 1
        %s197 = smul.addr %s196, 4
        %s198 = scalar_lea.vmem %s0, %s197
        %p199 = pneg %p40
        %p200 = pneg %p37
        %p201 = pneg %p61
        %p202 = pneg %p58
        %p203 = pneg %p82
        %p204 = pneg %p79
        %p205 = pneg %p103
        %p206 = pneg %p100
        %p207 = pneg %p124
        %p208 = pneg %p121
        %p209 = pneg %p150
        %p210 = pneg %p147
        %s211 = sand.u32 %s137, 1
        %s212 = scalar_lea.sflag [#allocation3], %s211
        %s213 = sand.u32 %s137, 1
        %s214 = smul.addr %s213, 8
        %s215 = scalar_lea.vmem [#allocation2], %s214
        %p216 = scmp.lt.s32.totalorder %s19, 1
        %s217 = scalar_select %p216, %s19, 1
        %s218 = smul.addr %s217, 4
        %s219 = scalar_lea.vmem %s0, %s218
        %v221 = vld [vmem:[%s219] sm:$0xf]
        %v222 = vunpack.c.l.bf16 %v221
        %v223 = vld [vmem:[%s1] sm:$0x1]
        %v224 = vld [vmem:[%s2] sm:$0x1]
        %vm225 = vcmask 261120
        %v226 = vsel %vm225, %v222, 0.0
        %227 = vadd.xlane.f32.xlu0 %v226
        %v228 = vpop.xlane.xlu0 %227
        %v229 = vrcp.pop 32.0
        %v230 = vmul.f32 %v228, %v229
        %v231 = vsub.f32 %v222, %v230
        %v232 = vmul.f32 %v231, %v231
        %v233 = vsel %vm225, %v232, 0.0
        %234 = vadd.xlane.f32.xlu0 %v233
        %v235 = vpop.xlane.xlu0 %234
        %v236 = vmul.f32 %v235, %v229
        %v237 = vadd.f32 %v236, 1e-05
        %v238 = vrsqrt.pop %v237
        %v239 = vmul.f32 %v231, %v238
        %v241 = vlaneseq
        %v242 = vshrl.u32 %v241, 7
        %v243 = vsub.s32 0, %v242
        %v244 = vrot.slane %v223, %v243
        %v246 = vmul.f32 %v239, %v244
        %v248 = vlaneseq
        %v249 = vshrl.u32 %v248, 7
        %v250 = vsub.s32 0, %v249
        %v251 = vrot.slane %v224, %v250
        %v253 = vadd.f32 %v246, %v251
        %v254 = vld [vmem:[%s3] sm:$0xf]
        %v255 = vld [vmem:[%s3 + $0x4] sm:$0xf]
        %v256 = vld [vmem:[%s3 + $0x8] sm:$0xf]
        %v257 = vld [vmem:[%s3 + $0xc] sm:$0xf]
        %v258 = vld [vmem:[%s3 + $0x10] sm:$0xf]
        %v259 = vld [vmem:[%s3 + $0x14] sm:$0xf]
        %v260 = vld [vmem:[%s3 + $0x18] sm:$0x1]
        %v261 = vpack.c.bf16 %v253, %v253
        %v262 = vld [vmem:[%s4] sm:$0x1]
        %v264 = vlaneseq
        %v265 = vshrl.u32 %v264, 7
        %v266 = vsub.s32 0, %v265
        %v267 = vrot.slane %v262, %v266
        %v276 = vunpack.c.l.b16 %v254
        %v277 = vunpack.c.l.b16 %v255
        %v278 = vunpack.c.l.b16 %v256
        %v279 = vunpack.c.l.b16 %v257
        %v280 = vunpack.c.l.b16 %v258
        %v281 = vunpack.c.l.b16 %v259
        %v282 = vunpack.c.l.b16 %v260
        %v283 = vpack.c.b16 %v277, %v276
        %v284 = vpack.c.b16 %v279, %v278
        %v285 = vpack.c.b16 %v281, %v280
        %v286 = vpack.c.b16 %v282, %v282
        %v288 = vsel %vm225, %v261, 0
        %v291 = vsel %vm225, %v283, 0
        %v294 = vsel %vm225, %v284, 0
        %v297 = vsel %vm225, %v285, 0
        %v300 = vsel %vm225, %v286, 0
        %302 = vmatprep.subr.bf16.mxu0 0
        %303 = vmatpush1.bf16.xpose.msra.mxu0 0
        %304 = vmatprep.subr.bf16.mxu0 0
        %305 = vmatpush1.bf16.xpose.msra.mxu0 0
        %306 = vmatprep.subr.bf16.mxu0 0
        %307 = vmatpush1.bf16.xpose.msra.mxu0 0
        %308 = vmatprep.subr.bf16.mxu0 0
        %309 = vmatpush1.bf16.xpose.msra.mxu0 0
        %310 = vmatprep.subr.bf16.mxu0 0
        %311 = vmatpush1.bf16.xpose.msra.mxu0 %v300
        %312 = vmatprep.subr.bf16.mxu0 0
        %313 = vmatpush1.bf16.xpose.msra.mxu0 %v297
        %314 = vmatprep.subr.bf16.mxu0 0
        %315 = vmatpush1.bf16.xpose.msra.mxu0 %v294
        %316 = vmatprep.subr.bf16.mxu0 0
        %317 = vmatpush1.bf16.xpose.msra.mxu0 %v291
        %318 = vmatprep.subr.bf16.mxu0 0
        %319 = vmatpush2.bf16.xpose.msra.mxu0 0
        %320 = vmatprep.subr.bf16.mxu0 0
        %321 = vmatpush2.bf16.xpose.msra.mxu0 0
        %322 = vmatprep.subr.bf16.mxu0 0
        %323 = vmatpush2.bf16.xpose.msra.mxu0 0
        %324 = vmatprep.subr.bf16.mxu0 0
        %325 = vmatpush2.bf16.xpose.msra.mxu0 0
        %326 = vmatprep.subr.bf16.mxu0 0
        %327 = vmatpush2.bf16.xpose.msra.mxu0 0
        %328 = vmatprep.subr.bf16.mxu0 0
        %329 = vmatpush2.bf16.xpose.msra.mxu0 0
        %330 = vmatprep.subr.bf16.mxu0 0
        %331 = vmatpush2.bf16.xpose.msra.mxu0 0
        %332 = vmatprep.subr.bf16.mxu0 0
        %333 = vmatpush2.bf16.xpose.msra.mxu0 0
        %334 = vmatprep.mubr.bf16.mxu0 0
        %335 = vmatmul.mubr.bf16.gmra.mxu0 %v288
        %v336 = vpop.f32.mrf.mxu0
        %v337 = vadd.f32 %v267, %v336
        %v338 = vpop.f32.mrf.mxu0
        %v339 = vpop.f32.mrf.mxu0
        %v340 = vpop.f32.mrf.mxu0
        %341 = vdwg.mxu0
        %vm342 = vcmask 408576
        %v343 = vsel %vm342, %v337, -inf
        %344 = vmax.xlane.f32.xlu0 %v343
        %v345 = vpop.xlane.xlu0 %344
        %v346 = vsub.f32 %v337, %v345
        %v347 = vmul.f32 %v346, 1.442695
        %v348 = vpow.pop %v347
        %v349 = vsel %vm342, %v348, 0.0
        %350 = vadd.xlane.f32.xlu0 %v349
        %v351 = vpop.xlane.xlu0 %350
        %v352 = vlog2.pop %v351
        %v353 = vmul.f32 %v352, 0.6931472
        %v354 = vsub.f32 %v346, %v353
        %355 = vst.msk [vmem:[%s215] sm:$0xff] %vm342, %v354
        %s356 = sand.u32 %s137, 1
        %s357 = scalar_lea.sflag [#allocation3], %s356
        %s358 = sand.u32 %s137, 1
        %s359 = smul.addr %s358, 8
        %s360 = scalar_lea.vmem [#allocation2], %s359
        // Predicated region
        $region41: #{transformer_forward.15} parent=39 // pred_check
          %p361 = pneg %p147
        $region42: #{transformer_forward.15} parent=39 // pred_check_branch
          %363 = sbr.rel (%p361) target = $region44
        $region43: #{transformer_forward.15} parent=39 // pred_region
          %s365 = ssub.s32 128, 128
          %366 = vsyncadd %s357, %s365
          %s367 = smul.addr %s19, 128
          %s368 = scalar_lea.hbm %s5, %s367
          %s370 = sshll.u32 %s360, 4
          %s371 = int_to_ptr.vmem [resolvable:$true] %s370
          %373 = dma.vmem_to_hbm [thread:$0]  %s371, 128, %s368, %s357
        $region44: #{transformer_forward.15} parent=39 // pred_fallthru
          _
      $region40: #{transformer_forward.15} parent=5 // pred_fallthru
        _
      %p374 = scmp.le.s32.totalorder 2, %s14
      // Predicated region
      $region45: #{transformer_forward.15} parent=5 // pred_check
        %p375 = pneg %p374
      $region46: #{transformer_forward.15} parent=5 // pred_check_branch
        %377 = sbr.rel (%p375) target = $region48
      $region47: #{transformer_forward.15} parent=5 // pred_region
        %s378 = ssub.s32 %s14, 2
        // Predicated region
        $region49: #{transformer_forward.15} parent=47 // pred_check
          %p379 = pneg %p153
        $region50: #{transformer_forward.15} parent=47 // pred_check_branch
          %381 = sbr.rel (%p379) target = $region52
        $region51: #{transformer_forward.15} parent=47 // pred_region
          %s382 = sand.u32 %s138, 1
          %s383 = scalar_lea.sflag [#allocation3], %s382
          %s384 = sand.u32 %s138, 1
          %s385 = smul.addr %s384, 8
          %s386 = scalar_lea.vmem [#allocation2], %s385
          %387 = dma.done %s383, 128
        $region52: #{transformer_forward.15} parent=47 // pred_fallthru
          _
      $region48: #{transformer_forward.15} parent=5 // pred_fallthru
        _
    $region6: #{transformer_forward.15} parent=1 // loop_footer
      %s18 = sadd.s32 1, %s14
    $region7: #{transformer_forward.15} parent=1 // loop_footer_branch
      %13 = sbr.rel target = $region3
    $region8: #{transformer_forward.15} parent=1 // loop_exit
      _
    %388 = vsyncpa [#allocation3], 1
    %s389 = scalar_lea.sflag [#allocation3], 1
    %390 = vsyncpa %s389, 1

// kernel: transformer_forward.11
$region0: #{transformer_forward.11}
  #allocation0 [shape = 'u32[]', space=smem, size = 0x4, offset = 0x4, fixed_abs, tag = 'smem constant byte address 0x4 - core index']
  #allocation1 [shape = 'u32[144,128]{1,0:T(1,128)}', space=vmem, size = 0x12000, scoped, tag = 'internal scratch']
  %s0 = inlined_call_operand.vmem [shape: bf16[16,32], index: 0, kind: input, shape index: {}]
  %s1 = inlined_call_operand.vmem [shape: bf16[16,32], index: 1, kind: input, shape index: {}]
  %s2 = inlined_call_operand.vmem [shape: bf16[32,32], index: 2, kind: input, shape index: {}]
  %s3 = inlined_call_operand.vmem [shape: f32[1,32], index: 3, kind: input, shape index: {}]
  %s4 = inlined_call_operand.vmem [shape: f32[1,32], index: 4, kind: input, shape index: {}]
  %s5 = inlined_call_operand.vmem [shape: f32[1,32], index: 5, kind: input, shape index: {}]
  %s6 = inlined_call_operand.vmem [shape: bf16[64,32], index: 6, kind: input, shape index: {}]
  %s7 = inlined_call_operand.vmem [shape: f32[1,64], index: 7, kind: input, shape index: {}]
  %s8 = inlined_call_operand.vmem [shape: bf16[32,64], index: 8, kind: input, shape index: {}]
  %s9 = inlined_call_operand.vmem [shape: f32[1,32], index: 9, kind: input, shape index: {}]
  %s10 = inlined_call_operand.vmem [shape: f32[1,32], index: 10, kind: input, shape index: {}]
  %s11 = inlined_call_operand.vmem [shape: f32[1,32], index: 11, kind: input, shape index: {}]
  %s12 = inlined_call_operand.vmem [shape: bf16[16,32], index: 12, kind: output, shape index: {}]
  %s13 = sld [smem:[#allocation0]]
  $region81: #{transformer_forward.11} parent=0
    _
  %s15 = ssub.s32 1, %s13
  %s16 = scalar_select 0, %s15, %s13
  loop: start=0, step=1, limit=4
  $region2: #{transformer_forward.11} parent=0 // loop_pre_header
    _
  $region3: #{transformer_forward.11} parent=0 // loop_header
    %s18 = sphi 0, %s22
    %p19 = scmp.ge.s32.totalorder %s18, 4
    %s28 = sphi 0, %s30
    %s31 = sphi 0, %s28
    %s32 = sphi 0, %s31
    %s48 = sphi 0, %s32
    %s54 = sphi 0, %s56
    %s57 = sphi 0, %s54
    %s58 = sphi 0, %s57
    %s74 = sphi 0, %s58
    %s78 = sphi 0, %s78
    %s80 = sphi 0, %s78
    %s81 = sphi 0, %s80
    %s95 = sphi 0, %s81
    %s99 = sphi 0, %s99
    %s101 = sphi 0, %s99
    %s102 = sphi 0, %s101
    %s116 = sphi 0, %s102
    %s120 = sphi 0, %s120
    %s122 = sphi 0, %s120
    %s123 = sphi 0, %s122
    %s137 = sphi 0, %s123
    %s141 = sphi 0, %s141
    %s143 = sphi 0, %s141
    %s144 = sphi 0, %s143
    %s158 = sphi 0, %s144
    %s162 = sphi 0, %s162
    %s164 = sphi 0, %s162
    %s165 = sphi 0, %s164
    %s179 = sphi 0, %s165
    %s183 = sphi 0, %s183
    %s185 = sphi 0, %s183
    %s186 = sphi 0, %s185
    %s200 = sphi 0, %s186
    %s204 = sphi 0, %s204
    %s206 = sphi 0, %s204
    %s207 = sphi 0, %s206
    %s221 = sphi 0, %s207
    %s225 = sphi 0, %s225
    %s227 = sphi 0, %s225
    %s228 = sphi 0, %s227
    %s242 = sphi 0, %s228
    %s246 = sphi 0, %s246
    %s248 = sphi 0, %s246
    %s249 = sphi 0, %s248
    %s263 = sphi 0, %s249
    %s267 = sphi 0, %s267
    %s269 = sphi 0, %s267
    %s270 = sphi 0, %s269
    %s284 = sphi 0, %s270
    %s290 = sphi 0, %s292
    %s293 = sphi 0, %s290
    %s294 = sphi 0, %s293
    %s310 = sphi 0, %s294
  $region4: #{transformer_forward.11} parent=0 // loop_header_branch
    %21 = sbr.rel (%p19) target = $region8
  $region5: #{transformer_forward.11} parent=0 // loop_body
    %s23 = ssub.s32 %s18, 1
    %s24 = ssub.s32 %s18, 2
    %s25 = sadd.s32 %s18, 1
    %s26 = ssub.s32 %s18, %s25
    %p27 = scmp.eq.s32.totalorder %s26, 0
    %s29 = sadd.s32 %s28, 1
    %s30 = scalar_select %p27, %s28, %s29
    %p33 = pneg %p27
    %p34 = scmp.eq.s32.totalorder %s18, 1
    %p35 = por %p33, %p34
    %p36 = scmp.ne.s32.totalorder %s28, %s31
    %p37 = scmp.eq.s32.totalorder %s18, 0
    %p38 = por %p36, %p37
    %p39 = scmp.ne.s32.totalorder %s28, %s31
    %p40 = scmp.eq.s32.totalorder %s23, 1
    %p41 = por %p39, %p40
    %p42 = scmp.ne.s32.totalorder %s31, %s32
    %p43 = scmp.eq.s32.totalorder %s23, 0
    %p44 = por %p42, %p43
    %p45 = scmp.ne.s32.totalorder %s31, %s32
    %p46 = scmp.eq.s32.totalorder %s24, 1
    %p47 = por %p45, %p46
    %p49 = scmp.ne.s32.totalorder %s32, %s48
    %p50 = scmp.eq.s32.totalorder %s24, 0
    %p51 = por %p49, %p50
    %s52 = ssub.s32 %s18, %s25
    %p53 = scmp.eq.s32.totalorder %s52, 0
    %s55 = sadd.s32 %s54, 1
    %s56 = scalar_select %p53, %s54, %s55
    %p59 = pneg %p53
    %p60 = scmp.eq.s32.totalorder %s18, 1
    %p61 = por %p59, %p60
    %p62 = scmp.ne.s32.totalorder %s54, %s57
    %p63 = scmp.eq.s32.totalorder %s18, 0
    %p64 = por %p62, %p63
    %p65 = scmp.ne.s32.totalorder %s54, %s57
    %p66 = scmp.eq.s32.totalorder %s23, 1
    %p67 = por %p65, %p66
    %p68 = scmp.ne.s32.totalorder %s57, %s58
    %p69 = scmp.eq.s32.totalorder %s23, 0
    %p70 = por %p68, %p69
    %p71 = scmp.ne.s32.totalorder %s57, %s58
    %p72 = scmp.eq.s32.totalorder %s24, 1
    %p73 = por %p71, %p72
    %p75 = scmp.ne.s32.totalorder %s58, %s74
    %p76 = scmp.eq.s32.totalorder %s24, 0
    %p77 = por %p75, %p76
    %s79 = sadd.s32 %s78, 1
    %p82 = scmp.eq.s32.totalorder %s18, 1
    %p83 = scmp.ne.s32.totalorder %s78, %s80
    %p84 = scmp.eq.s32.totalorder %s18, 0
    %p85 = por %p83, %p84
    %p86 = scmp.ne.s32.totalorder %s78, %s80
    %p87 = scmp.eq.s32.totalorder %s23, 1
    %p88 = por %p86, %p87
    %p89 = scmp.ne.s32.totalorder %s80, %s81
    %p90 = scmp.eq.s32.totalorder %s23, 0
    %p91 = por %p89, %p90
    %p92 = scmp.ne.s32.totalorder %s80, %s81
    %p93 = scmp.eq.s32.totalorder %s24, 1
    %p94 = por %p92, %p93
    %p96 = scmp.ne.s32.totalorder %s81, %s95
    %p97 = scmp.eq.s32.totalorder %s24, 0
    %p98 = por %p96, %p97
    %s100 = sadd.s32 %s99, 1
    %p103 = scmp.eq.s32.totalorder %s18, 1
    %p104 = scmp.ne.s32.totalorder %s99, %s101
    %p105 = scmp.eq.s32.totalorder %s18, 0
    %p106 = por %p104, %p105
    %p107 = scmp.ne.s32.totalorder %s99, %s101
    %p108 = scmp.eq.s32.totalorder %s23, 1
    %p109 = por %p107, %p108
    %p110 = scmp.ne.s32.totalorder %s101, %s102
    %p111 = scmp.eq.s32.totalorder %s23, 0
    %p112 = por %p110, %p111
    %p113 = scmp.ne.s32.totalorder %s101, %s102
    %p114 = scmp.eq.s32.totalorder %s24, 1
    %p115 = por %p113, %p114
    %p117 = scmp.ne.s32.totalorder %s102, %s116
    %p118 = scmp.eq.s32.totalorder %s24, 0
    %p119 = por %p117, %p118
    %s121 = sadd.s32 %s120, 1
    %p124 = scmp.eq.s32.totalorder %s18, 1
    %p125 = scmp.ne.s32.totalorder %s120, %s122
    %p126 = scmp.eq.s32.totalorder %s18, 0
    %p127 = por %p125, %p126
    %p128 = scmp.ne.s32.totalorder %s120, %s122
    %p129 = scmp.eq.s32.totalorder %s23, 1
    %p130 = por %p128, %p129
    %p131 = scmp.ne.s32.totalorder %s122, %s123
    %p132 = scmp.eq.s32.totalorder %s23, 0
    %p133 = por %p131, %p132
    %p134 = scmp.ne.s32.totalorder %s122, %s123
    %p135 = scmp.eq.s32.totalorder %s24, 1
    %p136 = por %p134, %p135
    %p138 = scmp.ne.s32.totalorder %s123, %s137
    %p139 = scmp.eq.s32.totalorder %s24, 0
    %p140 = por %p138, %p139
    %s142 = sadd.s32 %s141, 1
    %p145 = scmp.eq.s32.totalorder %s18, 1
    %p146 = scmp.ne.s32.totalorder %s141, %s143
    %p147 = scmp.eq.s32.totalorder %s18, 0
    %p148 = por %p146, %p147
    %p149 = scmp.ne.s32.totalorder %s141, %s143
    %p150 = scmp.eq.s32.totalorder %s23, 1
    %p151 = por %p149, %p150
    %p152 = scmp.ne.s32.totalorder %s143, %s144
    %p153 = scmp.eq.s32.totalorder %s23, 0
    %p154 = por %p152, %p153
    %p155 = scmp.ne.s32.totalorder %s143, %s144
    %p156 = scmp.eq.s32.totalorder %s24, 1
    %p157 = por %p155, %p156
    %p159 = scmp.ne.s32.totalorder %s144, %s158
    %p160 = scmp.eq.s32.totalorder %s24, 0
    %p161 = por %p159, %p160
    %s163 = sadd.s32 %s162, 1
    %p166 = scmp.eq.s32.totalorder %s18, 1
    %p167 = scmp.ne.s32.totalorder %s162, %s164
    %p168 = scmp.eq.s32.totalorder %s18, 0
    %p169 = por %p167, %p168
    %p170 = scmp.ne.s32.totalorder %s162, %s164
    %p171 = scmp.eq.s32.totalorder %s23, 1
    %p172 = por %p170, %p171
    %p173 = scmp.ne.s32.totalorder %s164, %s165
    %p174 = scmp.eq.s32.totalorder %s23, 0
    %p175 = por %p173, %p174
    %p176 = scmp.ne.s32.totalorder %s164, %s165
    %p177 = scmp.eq.s32.totalorder %s24, 1
    %p178 = por %p176, %p177
    %p180 = scmp.ne.s32.totalorder %s165, %s179
    %p181 = scmp.eq.s32.totalorder %s24, 0
    %p182 = por %p180, %p181
    %s184 = sadd.s32 %s183, 1
    %p187 = scmp.eq.s32.totalorder %s18, 1
    %p188 = scmp.ne.s32.totalorder %s183, %s185
    %p189 = scmp.eq.s32.totalorder %s18, 0
    %p190 = por %p188, %p189
    %p191 = scmp.ne.s32.totalorder %s183, %s185
    %p192 = scmp.eq.s32.totalorder %s23, 1
    %p193 = por %p191, %p192
    %p194 = scmp.ne.s32.totalorder %s185, %s186
    %p195 = scmp.eq.s32.totalorder %s23, 0
    %p196 = por %p194, %p195
    %p197 = scmp.ne.s32.totalorder %s185, %s186
    %p198 = scmp.eq.s32.totalorder %s24, 1
    %p199 = por %p197, %p198
    %p201 = scmp.ne.s32.totalorder %s186, %s200
    %p202 = scmp.eq.s32.totalorder %s24, 0
    %p203 = por %p201, %p202
    %s205 = sadd.s32 %s204, 1
    %p208 = scmp.eq.s32.totalorder %s18, 1
    %p209 = scmp.ne.s32.totalorder %s204, %s206
    %p210 = scmp.eq.s32.totalorder %s18, 0
    %p211 = por %p209, %p210
    %p212 = scmp.ne.s32.totalorder %s204, %s206
    %p213 = scmp.eq.s32.totalorder %s23, 1
    %p214 = por %p212, %p213
    %p215 = scmp.ne.s32.totalorder %s206, %s207
    %p216 = scmp.eq.s32.totalorder %s23, 0
    %p217 = por %p215, %p216
    %p218 = scmp.ne.s32.totalorder %s206, %s207
    %p219 = scmp.eq.s32.totalorder %s24, 1
    %p220 = por %p218, %p219
    %p222 = scmp.ne.s32.totalorder %s207, %s221
    %p223 = scmp.eq.s32.totalorder %s24, 0
    %p224 = por %p222, %p223
    %s226 = sadd.s32 %s225, 1
    %p229 = scmp.eq.s32.totalorder %s18, 1
    %p230 = scmp.ne.s32.totalorder %s225, %s227
    %p231 = scmp.eq.s32.totalorder %s18, 0
    %p232 = por %p230, %p231
    %p233 = scmp.ne.s32.totalorder %s225, %s227
    %p234 = scmp.eq.s32.totalorder %s23, 1
    %p235 = por %p233, %p234
    %p236 = scmp.ne.s32.totalorder %s227, %s228
    %p237 = scmp.eq.s32.totalorder %s23, 0
    %p238 = por %p236, %p237
    %p239 = scmp.ne.s32.totalorder %s227, %s228
    %p240 = scmp.eq.s32.totalorder %s24, 1
    %p241 = por %p239, %p240
    %p243 = scmp.ne.s32.totalorder %s228, %s242
    %p244 = scmp.eq.s32.totalorder %s24, 0
    %p245 = por %p243, %p244
    %s247 = sadd.s32 %s246, 1
    %p250 = scmp.eq.s32.totalorder %s18, 1
    %p251 = scmp.ne.s32.totalorder %s246, %s248
    %p252 = scmp.eq.s32.totalorder %s18, 0
    %p253 = por %p251, %p252
    %p254 = scmp.ne.s32.totalorder %s246, %s248
    %p255 = scmp.eq.s32.totalorder %s23, 1
    %p256 = por %p254, %p255
    %p257 = scmp.ne.s32.totalorder %s248, %s249
    %p258 = scmp.eq.s32.totalorder %s23, 0
    %p259 = por %p257, %p258
    %p260 = scmp.ne.s32.totalorder %s248, %s249
    %p261 = scmp.eq.s32.totalorder %s24, 1
    %p262 = por %p260, %p261
    %p264 = scmp.ne.s32.totalorder %s249, %s263
    %p265 = scmp.eq.s32.totalorder %s24, 0
    %p266 = por %p264, %p265
    %s268 = sadd.s32 %s267, 1
    %p271 = scmp.eq.s32.totalorder %s18, 1
    %p272 = scmp.ne.s32.totalorder %s267, %s269
    %p273 = scmp.eq.s32.totalorder %s18, 0
    %p274 = por %p272, %p273
    %p275 = scmp.ne.s32.totalorder %s267, %s269
    %p276 = scmp.eq.s32.totalorder %s23, 1
    %p277 = por %p275, %p276
    %p278 = scmp.ne.s32.totalorder %s269, %s270
    %p279 = scmp.eq.s32.totalorder %s23, 0
    %p280 = por %p278, %p279
    %p281 = scmp.ne.s32.totalorder %s269, %s270
    %p282 = scmp.eq.s32.totalorder %s24, 1
    %p283 = por %p281, %p282
    %p285 = scmp.ne.s32.totalorder %s270, %s284
    %p286 = scmp.eq.s32.totalorder %s24, 0
    %p287 = por %p285, %p286
    %s288 = ssub.s32 %s18, %s25
    %p289 = scmp.eq.s32.totalorder %s288, 0
    %s291 = sadd.s32 %s290, 1
    %s292 = scalar_select %p289, %s290, %s291
    %p295 = pneg %p289
    %p296 = scmp.eq.s32.totalorder %s18, 1
    %p297 = por %p295, %p296
    %p298 = scmp.ne.s32.totalorder %s290, %s293
    %p299 = scmp.eq.s32.totalorder %s18, 0
    %p300 = por %p298, %p299
    %p301 = scmp.ne.s32.totalorder %s290, %s293
    %p302 = scmp.eq.s32.totalorder %s23, 1
    %p303 = por %p301, %p302
    %p304 = scmp.ne.s32.totalorder %s293, %s294
    %p305 = scmp.eq.s32.totalorder %s23, 0
    %p306 = por %p304, %p305
    %p307 = scmp.ne.s32.totalorder %s293, %s294
    %p308 = scmp.eq.s32.totalorder %s24, 1
    %p309 = por %p307, %p308
    %p311 = scmp.ne.s32.totalorder %s294, %s310
    %p312 = scmp.eq.s32.totalorder %s24, 0
    %p313 = por %p311, %p312
    %p314 = scmp.le.s32.totalorder 1, %s18
    %p315 = scmp.lt.s32.totalorder %s18, 3
    %p316 = pnand %p314, %p315
    %p317 = pneg %p316
    // Predicated region
    $region9: #{transformer_forward.11} parent=5 // pred_check
      _
    $region10: #{transformer_forward.11} parent=5 // pred_check_branch
      %319 = sbr.rel (%p316) target = $region12
    $region11: #{transformer_forward.11} parent=5 // pred_region
      %s320 = ssub.s32 %s18, 1
      // Predicated region
      $region13: #{transformer_forward.11} parent=11 // pred_check
        %p321 = pneg %p91
      $region14: #{transformer_forward.11} parent=11 // pred_check_branch
        %323 = sbr.rel (%p321) target = $region16
      $region15: #{transformer_forward.11} parent=11 // pred_region
        _
      $region16: #{transformer_forward.11} parent=11 // pred_fallthru
        _
      // Predicated region
      $region17: #{transformer_forward.11} parent=11 // pred_check
        %p324 = pneg %p112
      $region18: #{transformer_forward.11} parent=11 // pred_check_branch
        %326 = sbr.rel (%p324) target = $region20
      $region19: #{transformer_forward.11} parent=11 // pred_region
        _
      $region20: #{transformer_forward.11} parent=11 // pred_fallthru
        _
      // Predicated region
      $region21: #{transformer_forward.11} parent=11 // pred_check
        %p327 = pneg %p133
      $region22: #{transformer_forward.11} parent=11 // pred_check_branch
        %329 = sbr.rel (%p327) target = $region24
      $region23: #{transformer_forward.11} parent=11 // pred_region
        _
      $region24: #{transformer_forward.11} parent=11 // pred_fallthru
        _
      // Predicated region
      $region25: #{transformer_forward.11} parent=11 // pred_check
        %p330 = pneg %p154
      $region26: #{transformer_forward.11} parent=11 // pred_check_branch
        %332 = sbr.rel (%p330) target = $region28
      $region27: #{transformer_forward.11} parent=11 // pred_region
        _
      $region28: #{transformer_forward.11} parent=11 // pred_fallthru
        _
      // Predicated region
      $region29: #{transformer_forward.11} parent=11 // pred_check
        %p333 = pneg %p175
      $region30: #{transformer_forward.11} parent=11 // pred_check_branch
        %335 = sbr.rel (%p333) target = $region32
      $region31: #{transformer_forward.11} parent=11 // pred_region
        _
      $region32: #{transformer_forward.11} parent=11 // pred_fallthru
        _
      // Predicated region
      $region33: #{transformer_forward.11} parent=11 // pred_check
        %p336 = pneg %p196
      $region34: #{transformer_forward.11} parent=11 // pred_check_branch
        %338 = sbr.rel (%p336) target = $region36
      $region35: #{transformer_forward.11} parent=11 // pred_region
        _
      $region36: #{transformer_forward.11} parent=11 // pred_fallthru
        _
      // Predicated region
      $region37: #{transformer_forward.11} parent=11 // pred_check
        %p339 = pneg %p217
      $region38: #{transformer_forward.11} parent=11 // pred_check_branch
        %341 = sbr.rel (%p339) target = $region40
      $region39: #{transformer_forward.11} parent=11 // pred_region
        _
      $region40: #{transformer_forward.11} parent=11 // pred_fallthru
        _
      // Predicated region
      $region41: #{transformer_forward.11} parent=11 // pred_check
        %p342 = pneg %p238
      $region42: #{transformer_forward.11} parent=11 // pred_check_branch
        %344 = sbr.rel (%p342) target = $region44
      $region43: #{transformer_forward.11} parent=11 // pred_region
        _
      $region44: #{transformer_forward.11} parent=11 // pred_fallthru
        _
      // Predicated region
      $region45: #{transformer_forward.11} parent=11 // pred_check
        %p345 = pneg %p259
      $region46: #{transformer_forward.11} parent=11 // pred_check_branch
        %347 = sbr.rel (%p345) target = $region48
      $region47: #{transformer_forward.11} parent=11 // pred_region
        _
      $region48: #{transformer_forward.11} parent=11 // pred_fallthru
        _
      // Predicated region
      $region49: #{transformer_forward.11} parent=11 // pred_check
        %p348 = pneg %p280
      $region50: #{transformer_forward.11} parent=11 // pred_check_branch
        %350 = sbr.rel (%p348) target = $region52
      $region51: #{transformer_forward.11} parent=11 // pred_region
        _
      $region52: #{transformer_forward.11} parent=11 // pred_fallthru
        _
    $region12: #{transformer_forward.11} parent=5 // pred_fallthru
      _
    %p351 = scmp.lt.s32.totalorder %s18, 2
    // Predicated region
    $region53: #{transformer_forward.11} parent=5 // pred_check
      %p352 = pneg %p351
    $region54: #{transformer_forward.11} parent=5 // pred_check_branch
      %354 = sbr.rel (%p352) target = $region56
    $region55: #{transformer_forward.11} parent=5 // pred_region
      // Predicated region
      $region57: #{transformer_forward.11} parent=55 // pred_check
        %p355 = pneg %p38
      $region58: #{transformer_forward.11} parent=55 // pred_check_branch
        %357 = sbr.rel (%p355) target = $region60
      $region59: #{transformer_forward.11} parent=55 // pred_region
        %p358 = scmp.lt.s32.totalorder %s18, 1
        %s359 = scalar_select %p358, %s18, 1
        %s360 = smul.addr %s359, 4
        %s361 = scalar_lea.vmem %s0, %s360
      $region60: #{transformer_forward.11} parent=55 // pred_fallthru
        _
      // Predicated region
      $region61: #{transformer_forward.11} parent=55 // pred_check
        %p362 = pneg %p64
      $region62: #{transformer_forward.11} parent=55 // pred_check_branch
        %364 = sbr.rel (%p362) target = $region64
      $region63: #{transformer_forward.11} parent=55 // pred_region
        %p365 = scmp.lt.s32.totalorder %s18, 1
        %s366 = scalar_select %p365, %s18, 1
        %s367 = smul.addr %s366, 4
        %s368 = scalar_lea.vmem %s1, %s367
      $region64: #{transformer_forward.11} parent=55 // pred_fallthru
        _
    $region56: #{transformer_forward.11} parent=5 // pred_fallthru
      _
    %p369 = scmp.le.s32.totalorder 1, %s18
    %p370 = scmp.lt.s32.totalorder %s18, 3
    %p371 = pnand %p369, %p370
    %p372 = pneg %p371
    // Predicated region
    $region65: #{transformer_forward.11} parent=5 // pred_check
      _
    $region66: #{transformer_forward.11} parent=5 // pred_check_branch
      %374 = sbr.rel (%p371) target = $region68
    $region67: #{transformer_forward.11} parent=5 // pred_region
      %s375 = ssub.s32 %s18, 1
      %p376 = scmp.lt.s32.totalorder %s23, 1
      %s377 = scalar_select %p376, %s23, 1
      %s378 = smul.addr %s377, 4
      %s379 = scalar_lea.vmem %s0, %s378
      %p380 = pneg %p44
      %p381 = pneg %p41
      %p382 = scmp.lt.s32.totalorder %s23, 1
      %s383 = scalar_select %p382, %s23, 1
      %s384 = smul.addr %s383, 4
      %s385 = scalar_lea.vmem %s1, %s384
      %p386 = pneg %p70
      %p387 = pneg %p67
      %p388 = pneg %p91
      %p389 = pneg %p88
      %p390 = pneg %p112
      %p391 = pneg %p109
      %p392 = pneg %p133
      %p393 = pneg %p130
      %p394 = pneg %p154
      %p395 = pneg %p151
      %p396 = pneg %p175
      %p397 = pneg %p172
      %p398 = pneg %p196
      %p399 = pneg %p193
      %p400 = pneg %p217
      %p401 = pneg %p214
      %p402 = pneg %p238
      %p403 = pneg %p235
      %p404 = pneg %p259
      %p405 = pneg %p256
      %p406 = pneg %p280
      %p407 = pneg %p277
      %p408 = pneg %p306
      %p409 = pneg %p303
      %p410 = scmp.lt.s32.totalorder %s23, 1
      %s411 = scalar_select %p410, %s23, 1
      %s412 = smul.addr %s411, 4
      %s413 = scalar_lea.vmem %s12, %s412
      %p414 = scmp.lt.s32.totalorder %s23, 1
      %s415 = scalar_select %p414, %s23, 1
      %s416 = smul.addr %s415, 4
      %s417 = scalar_lea.vmem %s0, %s416
      %p418 = scmp.lt.s32.totalorder %s23, 1
      %s419 = scalar_select %p418, %s23, 1
      %s420 = smul.addr %s419, 4
      %s421 = scalar_lea.vmem %s1, %s420
      %p422 = scmp.lt.s32.totalorder %s23, 1
      %s423 = scalar_select %p422, %s23, 1
      %s424 = smul.addr %s423, 4
      %s425 = scalar_lea.vmem %s12, %s424
      %v427 = vld [vmem:[%s417] sm:$0xf]
      %v428 = vld [vmem:[%s2] sm:$0xf]
      %v429 = vld [vmem:[%s2 + $0x4] sm:$0xf]
      %v430 = vld [vmem:[%s2 + $0x8] sm:$0xf]
      %v431 = vld [vmem:[%s2 + $0xc] sm:$0xf]
      %v432 = vld [vmem:[%s3] sm:$0x1]
      %v434 = vlaneseq
      %v435 = vshrl.u32 %v434, 7
      %v436 = vsub.s32 0, %v435
      %v437 = vrot.slane %v432, %v436
      %v443 = vunpack.c.l.b16 %v428
      %v444 = vunpack.c.l.b16 %v429
      %v445 = vunpack.c.l.b16 %v430
      %v446 = vunpack.c.l.b16 %v431
      %v447 = vpack.c.b16 %v444, %v443
      %v448 = vpack.c.b16 %v446, %v445
      %vm449 = vcmask 261120
      %v451 = vsel %vm449, %v427, 0
      %v454 = vsel %vm449, %v447, 0
      %v457 = vsel %vm449, %v448, 0
      %459 = vmatprep.subr.bf16.mxu0 0
      %460 = vmatpush1.bf16.xpose.msra.mxu0 0
      %461 = vmatprep.subr.bf16.mxu0 0
      %462 = vmatpush1.bf16.xpose.msra.mxu0 0
      %463 = vmatprep.subr.bf16.mxu0 0
      %464 = vmatpush1.bf16.xpose.msra.mxu0 0
      %465 = vmatprep.subr.bf16.mxu0 0
      %466 = vmatpush1.bf16.xpose.msra.mxu0 0
      %467 = vmatprep.subr.bf16.mxu0 0
      %468 = vmatpush1.bf16.xpose.msra.mxu0 0
      %469 = vmatprep.subr.bf16.mxu0 0
      %470 = vmatpush1.bf16.xpose.msra.mxu0 0
      %471 = vmatprep.subr.bf16.mxu0 0
      %472 = vmatpush1.bf16.xpose.msra.mxu0 %v457
      %473 = vmatprep.subr.bf16.mxu0 0
      %474 = vmatpush1.bf16.xpose.msra.mxu0 %v454
      %475 = vmatprep.subr.bf16.mxu0 0
      %476 = vmatpush2.bf16.xpose.msra.mxu0 0
      %477 = vmatprep.subr.bf16.mxu0 0
      %478 = vmatpush2.bf16.xpose.msra.mxu0 0
      %479 = vmatprep.subr.bf16.mxu0 0
      %480 = vmatpush2.bf16.xpose.msra.mxu0 0
      %481 = vmatprep.subr.bf16.mxu0 0
      %482 = vmatpush2.bf16.xpose.msra.mxu0 0
      %483 = vmatprep.subr.bf16.mxu0 0
      %484 = vmatpush2.bf16.xpose.msra.mxu0 0
      %485 = vmatprep.subr.bf16.mxu0 0
      %486 = vmatpush2.bf16.xpose.msra.mxu0 0
      %487 = vmatprep.subr.bf16.mxu0 0
      %488 = vmatpush2.bf16.xpose.msra.mxu0 0
      %489 = vmatprep.subr.bf16.mxu0 0
      %490 = vmatpush2.bf16.xpose.msra.mxu0 0
      %491 = vmatprep.mubr.bf16.mxu0 0
      %492 = vmatmul.mubr.bf16.gmra.mxu0 %v451
      %v493 = vpop.f32.mrf.mxu0
      %v494 = vadd.f32 %v437, %v493
      %v495 = vpop.f32.mrf.mxu0
      %v496 = vpop.f32.mrf.mxu0
      %v497 = vpop.f32.mrf.mxu0
      %498 = vdwg.mxu0
      %v499 = vld [vmem:[%s421] sm:$0xf]
      %v500 = vunpack.c.l.bf16 %v499
      %v501 = vadd.f32 %v500, %v494
      %v502 = vld [vmem:[%s4] sm:$0x1]
      %v503 = vld [vmem:[%s5] sm:$0x1]
      %v504 = vsel %vm449, %v501, 0.0
      %505 = vadd.xlane.f32.xlu0 %v504
      %v506 = vpop.xlane.xlu0 %505
      %v507 = vrcp.pop 32.0
      %v508 = vmul.f32 %v506, %v507
      %v509 = vsub.f32 %v501, %v508
      %v510 = vmul.f32 %v509, %v509
      %v511 = vsel %vm449, %v510, 0.0
      %512 = vadd.xlane.f32.xlu0 %v511
      %v513 = vpop.xlane.xlu0 %512
      %v514 = vmul.f32 %v513, %v507
      %v515 = vadd.f32 %v514, 1e-05
      %v516 = vrsqrt.pop %v515
      %v517 = vmul.f32 %v509, %v516
      %v519 = vlaneseq
      %v520 = vshrl.u32 %v519, 7
      %v521 = vsub.s32 0, %v520
      %v522 = vrot.slane %v502, %v521
      %v524 = vmul.f32 %v517, %v522
      %v526 = vlaneseq
      %v527 = vshrl.u32 %v526, 7
      %v528 = vsub.s32 0, %v527
      %v529 = vrot.slane %v503, %v528
      %v531 = vadd.f32 %v524, %v529
      %v532 = vld [vmem:[%s6] sm:$0xf]
      %v533 = vld [vmem:[%s6 + $0x4] sm:$0xf]
      %v534 = vld [vmem:[%s6 + $0x8] sm:$0xf]
      %v535 = vld [vmem:[%s6 + $0xc] sm:$0xf]
      %v536 = vld [vmem:[%s6 + $0x10] sm:$0xf]
      %v537 = vld [vmem:[%s6 + $0x14] sm:$0xf]
      %v538 = vld [vmem:[%s6 + $0x18] sm:$0xf]
      %v539 = vld [vmem:[%s6 + $0x1c] sm:$0xf]
      %v540 = vpack.c.bf16 %v531, %v531
      %v541 = vld [vmem:[%s7] sm:$0x1]
      %v543 = vlaneseq
      %v544 = vshrl.u32 %v543, 7
      %v545 = vsub.s32 0, %v544
      %v546 = vrot.slane %v541, %v545
      %v556 = vunpack.c.l.b16 %v532
      %v557 = vunpack.c.l.b16 %v533
      %v558 = vunpack.c.l.b16 %v534
      %v559 = vunpack.c.l.b16 %v535
      %v560 = vunpack.c.l.b16 %v536
      %v561 = vunpack.c.l.b16 %v537
      %v562 = vunpack.c.l.b16 %v538
      %v563 = vunpack.c.l.b16 %v539
      %v564 = vpack.c.b16 %v557, %v556
      %v565 = vpack.c.b16 %v559, %v558
      %v566 = vpack.c.b16 %v561, %v560
      %v567 = vpack.c.b16 %v563, %v562
      %v569 = vsel %vm449, %v540, 0
      %v572 = vsel %vm449, %v564, 0
      %v575 = vsel %vm449, %v565, 0
      %v578 = vsel %vm449, %v566, 0
      %v581 = vsel %vm449, %v567, 0
      %583 = vmatprep.subr.bf16.mxu0 0
      %584 = vmatpush1.bf16.xpose.msra.mxu0 0
      %585 = vmatprep.subr.bf16.mxu0 0
      %586 = vmatpush1.bf16.xpose.msra.mxu0 0
      %587 = vmatprep.subr.bf16.mxu0 0
      %588 = vmatpush1.bf16.xpose.msra.mxu0 0
      %589 = vmatprep.subr.bf16.mxu0 0
      %590 = vmatpush1.bf16.xpose.msra.mxu0 0
      %591 = vmatprep.subr.bf16.mxu0 0
      %592 = vmatpush1.bf16.xpose.msra.mxu0 %v581
      %593 = vmatprep.subr.bf16.mxu0 0
      %594 = vmatpush1.bf16.xpose.msra.mxu0 %v578
      %595 = vmatprep.subr.bf16.mxu0 0
      %596 = vmatpush1.bf16.xpose.msra.mxu0 %v575
      %597 = vmatprep.subr.bf16.mxu0 0
      %598 = vmatpush1.bf16.xpose.msra.mxu0 %v572
      %599 = vmatprep.subr.bf16.mxu0 0
      %600 = vmatpush2.bf16.xpose.msra.mxu0 0
      %601 = vmatprep.subr.bf16.mxu0 0
      %602 = vmatpush2.bf16.xpose.msra.mxu0 0
      %603 = vmatprep.subr.bf16.mxu0 0
      %604 = vmatpush2.bf16.xpose.msra.mxu0 0
      %605 = vmatprep.subr.bf16.mxu0 0
      %606 = vmatpush2.bf16.xpose.msra.mxu0 0
      %607 = vmatprep.subr.bf16.mxu0 0
      %608 = vmatpush2.bf16.xpose.msra.mxu0 0
      %609 = vmatprep.subr.bf16.mxu0 0
      %610 = vmatpush2.bf16.xpose.msra.mxu0 0
      %611 = vmatprep.subr.bf16.mxu0 0
      %612 = vmatpush2.bf16.xpose.msra.mxu0 0
      %613 = vmatprep.subr.bf16.mxu0 0
      %614 = vmatpush2.bf16.xpose.msra.mxu0 0
      %615 = vmatprep.mubr.bf16.mxu0 0
      %616 = vmatmul.mubr.bf16.gmra.mxu0 %v569
      %v617 = vpop.f32.mrf.mxu0
      %v618 = vadd.f32 %v546, %v617
      %v619 = vpop.f32.mrf.mxu0
      %v620 = vpop.f32.mrf.mxu0
      %v621 = vpop.f32.mrf.mxu0
      %622 = vdwg.mxu0
      %v623 = vmax.f32 %v618, 0.0
      %v624 = vld [vmem:[%s8] sm:$0xf]
      %v625 = vld [vmem:[%s8 + $0x4] sm:$0xf]
      %v626 = vld [vmem:[%s8 + $0x8] sm:$0xf]
      %v627 = vld [vmem:[%s8 + $0xc] sm:$0xf]
      %v628 = vpack.c.bf16 %v623, %v623
      %v629 = vld [vmem:[%s9] sm:$0x1]
      %v631 = vlaneseq
      %v632 = vshrl.u32 %v631, 7
      %v633 = vsub.s32 0, %v632
      %v634 = vrot.slane %v629, %v633
      %v640 = vunpack.c.l.b16 %v624
      %v641 = vunpack.c.l.b16 %v625
      %v642 = vunpack.c.l.b16 %v626
      %v643 = vunpack.c.l.b16 %v627
      %v644 = vpack.c.b16 %v641, %v640
      %v645 = vpack.c.b16 %v643, %v642
      %vm646 = vcmask 523264
      %v648 = vsel %vm646, %v628, 0
      %v651 = vsel %vm646, %v644, 0
      %v654 = vsel %vm646, %v645, 0
      %656 = vmatprep.subr.bf16.mxu0 0
      %657 = vmatpush1.bf16.xpose.msra.mxu0 0
      %658 = vmatprep.subr.bf16.mxu0 0
      %659 = vmatpush1.bf16.xpose.msra.mxu0 0
      %660 = vmatprep.subr.bf16.mxu0 0
      %661 = vmatpush1.bf16.xpose.msra.mxu0 0
      %662 = vmatprep.subr.bf16.mxu0 0
      %663 = vmatpush1.bf16.xpose.msra.mxu0 0
      %664 = vmatprep.subr.bf16.mxu0 0
      %665 = vmatpush1.bf16.xpose.msra.mxu0 0
      %666 = vmatprep.subr.bf16.mxu0 0
      %667 = vmatpush1.bf16.xpose.msra.mxu0 0
      %668 = vmatprep.subr.bf16.mxu0 0
      %669 = vmatpush1.bf16.xpose.msra.mxu0 %v654
      %670 = vmatprep.subr.bf16.mxu0 0
      %671 = vmatpush1.bf16.xpose.msra.mxu0 %v651
      %672 = vmatprep.subr.bf16.mxu0 0
      %673 = vmatpush2.bf16.xpose.msra.mxu0 0
      %674 = vmatprep.subr.bf16.mxu0 0
      %675 = vmatpush2.bf16.xpose.msra.mxu0 0
      %676 = vmatprep.subr.bf16.mxu0 0
      %677 = vmatpush2.bf16.xpose.msra.mxu0 0
      %678 = vmatprep.subr.bf16.mxu0 0
      %679 = vmatpush2.bf16.xpose.msra.mxu0 0
      %680 = vmatprep.subr.bf16.mxu0 0
      %681 = vmatpush2.bf16.xpose.msra.mxu0 0
      %682 = vmatprep.subr.bf16.mxu0 0
      %683 = vmatpush2.bf16.xpose.msra.mxu0 0
      %684 = vmatprep.subr.bf16.mxu0 0
      %685 = vmatpush2.bf16.xpose.msra.mxu0 0
      %686 = vmatprep.subr.bf16.mxu0 0
      %687 = vmatpush2.bf16.xpose.msra.mxu0 0
      %688 = vmatprep.mubr.bf16.mxu0 0
      %689 = vmatmul.mubr.bf16.gmra.mxu0 %v648
      %v690 = vpop.f32.mrf.mxu0
      %v691 = vadd.f32 %v634, %v690
      %v692 = vpop.f32.mrf.mxu0
      %v693 = vpop.f32.mrf.mxu0
      %v694 = vpop.f32.mrf.mxu0
      %695 = vdwg.mxu0
      %v696 = vadd.f32 %v531, %v691
      %v697 = vld [vmem:[%s10] sm:$0x1]
      %v698 = vld [vmem:[%s11] sm:$0x1]
      %v699 = vsel %vm449, %v696, 0.0
      %700 = vadd.xlane.f32.xlu0 %v699
      %v701 = vpop.xlane.xlu0 %700
      %v702 = vmul.f32 %v701, %v507
      %v703 = vsub.f32 %v696, %v702
      %v704 = vmul.f32 %v703, %v703
      %v705 = vsel %vm449, %v704, 0.0
      %706 = vadd.xlane.f32.xlu0 %v705
      %v707 = vpop.xlane.xlu0 %706
      %v708 = vmul.f32 %v707, %v507
      %v709 = vadd.f32 %v708, 1e-05
      %v710 = vrsqrt.pop %v709
      %v711 = vmul.f32 %v703, %v710
      %v713 = vlaneseq
      %v714 = vshrl.u32 %v713, 7
      %v715 = vsub.s32 0, %v714
      %v716 = vrot.slane %v697, %v715
      %v718 = vmul.f32 %v711, %v716
      %v720 = vlaneseq
      %v721 = vshrl.u32 %v720, 7
      %v722 = vsub.s32 0, %v721
      %v723 = vrot.slane %v698, %v722
      %v725 = vadd.f32 %v718, %v723
      %v726 = vpack.c.bf16 %v725, %v725
      %vm727 = vcmask 257024
      %728 = vst.msk [vmem:[%s425] sm:$0xf] %vm727, %v726
      %p729 = scmp.lt.s32.totalorder %s23, 1
      %s730 = scalar_select %p729, %s23, 1
      %s731 = smul.addr %s730, 4
      %s732 = scalar_lea.vmem %s12, %s731
      // Predicated region
      $region69: #{transformer_forward.11} parent=67 // pred_check
        %p733 = pneg %p303
      $region70: #{transformer_forward.11} parent=67 // pred_check_branch
        %735 = sbr.rel (%p733) target = $region72
      $region71: #{transformer_forward.11} parent=67 // pred_region
        _
      $region72: #{transformer_forward.11} parent=67 // pred_fallthru
        _
    $region68: #{transformer_forward.11} parent=5 // pred_fallthru
      _
    %p736 = scmp.le.s32.totalorder 2, %s18
    // Predicated region
    $region73: #{transformer_forward.11} parent=5 // pred_check
      %p737 = pneg %p736
    $region74: #{transformer_forward.11} parent=5 // pred_check_branch
      %739 = sbr.rel (%p737) target = $region76
    $region75: #{transformer_forward.11} parent=5 // pred_region
      %s740 = ssub.s32 %s18, 2
      // Predicated region
      $region77: #{transformer_forward.11} parent=75 // pred_check
        %p741 = pneg %p309
      $region78: #{transformer_forward.11} parent=75 // pred_check_branch
        %743 = sbr.rel (%p741) target = $region80
      $region79: #{transformer_forward.11} parent=75 // pred_region
        %p744 = scmp.lt.s32.totalorder %s24, 1
        %s745 = scalar_select %p744, %s24, 1
        %s746 = smul.addr %s745, 4
        %s747 = scalar_lea.vmem %s12, %s746
      $region80: #{transformer_forward.11} parent=75 // pred_fallthru
        _
    $region76: #{transformer_forward.11} parent=5 // pred_fallthru
      _
  $region6: #{transformer_forward.11} parent=0 // loop_footer
    %s22 = sadd.s32 1, %s18
  $region7: #{transformer_forward.11} parent=0 // loop_footer_branch
    %17 = sbr.rel target = $region3
  $region8: #{transformer_forward.11} parent=0 // loop_exit
    _

</llo_original>
